<compile_context>
chip_gen: v7x
topology: tpu7x:2x2x1
jax: 0.10.0
libtpu: 0.0.40
codegen_flags: <defaults>
</compile_context>

<pallas_src>
import functools
import math

import jax
import jax.numpy as jnp
from jax.experimental import pallas as pl
from jax.experimental.pallas import tpu as pltpu

_SQRT1_2 = 0.7071067811865476
# True -> jax.nn.gelu(approximate=True): tanh on the (otherwise idle) EUP slot,
# slightly different numerics than torch's default erf GELU.  Default False = exact.
USE_TANH_GELU = False


def _gelu(x):
    if USE_TANH_GELU:
        return jax.nn.gelu(x, approximate=True)
    return 0.5 * x * (1.0 + jax.lax.erf(x * _SQRT1_2))


def _round_up(x, m):
    return (x + m - 1) // m * m


# ---------------------------------------------------------------------------
# Fused Stage kernel: grid axis = block index; activation resident in o_ref.
# ---------------------------------------------------------------------------
def _stage_kernel(x_ref, mask_ref, wdw_ref, off_ref, w1_ref, b1_ref,
                  w2_ref, b2_ref, v1_ref, c1_ref, v2_ref, c2_ref,
                  o_ref, *, K):
    # x_ref / o_ref : (M, D, L)  with L = B * N_seg (zero-gap packed, lane-dense)
    # mask_ref      : (1, L)     {0,1} valid-lane mask (gap lanes are the conv halo)
    # wdw/off       : (C, K) / (C, 1)        C = M*D, BN fully fused
    # w1/b1, w2/b2  : (M, dff, D)/(M, dff, 1), (M, D, dff)/(M, D, 1)
    # v1/c1         : (M, Mr, D, 1) / (Mr, D, 1)
    # v2/c2         : (Mr, M, D, 1) / (M, D, 1)
    blk = pl.program_id(0)

    @pl.when(blk == 0)
    def _():
        o_ref[...] = x_ref[...]          # seed the VMEM-resident activation carry

    M, D, L = o_ref.shape
    C = M * D
    HW = K // 2

    x = o_ref[...]                                        # (M, D, L), stays in VMEM
    # One gap-mask multiply per block: zeroes the inter-batch gap lanes that the
    # previous block's biases contaminated, restoring the conv's zero halo.
    xc = x.reshape(C, L) * mask_ref[...]                  # (C, L)

    # ---- depthwise reparam conv (large+small kernels + BNs, fused) ------------
    # K static taps as XLU lane rotations of the zero-gap activation (no scratch,
    # no unaligned shifted slices, no per-tap mask).
    w = wdw_ref[...]                                      # (C, K)
    acc = w[:, HW:HW + 1] * xc                            # center tap (shift 0)
    for k in range(K):                                    # K small, static unroll
        if k == HW:
            continue
        acc = acc + w[:, k:k + 1] * pltpu.roll(xc, shift=(HW - k) % L, axis=1)
    y = (acc + off_ref[...]).reshape(M, D, L)

    # ---- ConvFFN1 (groups = nvars): D -> dff -> D, batched over M on the MXU --
    h = jnp.einsum('mfd,mdl->mfl', w1_ref[...], y,
                   preferred_element_type=jnp.float32) + b1_ref[...]
    h = _gelu(h)
    z = jnp.einsum('mdf,mfl->mdl', w2_ref[...], h,
                   preferred_element_type=jnp.float32) + b2_ref[...]

    # ---- ConvFFN2 (groups = dmodel): M -> Mr -> M.  Contraction dim is only
    #      nvars (tiny), so VPU broadcast-MACs; no M<->D transpose, MXU stays free.
    v1 = v1_ref[...]                                      # (M, Mr, D, 1)
    v2 = v2_ref[...]                                      # (Mr, M, D, 1)
    Mr = v2.shape[0]
    h2 = jnp.zeros((Mr, D, L), jnp.float32)
    for m in range(M):                                    # M tiny, static
        h2 = h2 + v1[m] * z[m][None]
    h2 = _gelu(h2 + c1_ref[...])
    g = jnp.zeros((M, D, L), jnp.float32)
    for r in range(Mr):                                   # Mr tiny, static
        g = g + v2[r] * h2[r][None]

    # ---- residual: write the carry (VMEM-resident; HBM writeback only at grid end)
    o_ref[...] = x + g + c2_ref[...]


# ---------------------------------------------------------------------------
# Host-side parameter prep: stack per-block params, pre-transpose ffn2 weights
# into the broadcast-friendly kernel layout (tiny, done once at trace time).
# ---------------------------------------------------------------------------
def _prep_stage_params(params_list):
    st = jax.tree_util.tree_map(lambda *xs: jnp.stack(xs, axis=0), *params_list)
    wdw, off = st["w_dw"], st["off_dw"]                       # (NB,C,K), (NB,C,1)
    w1, b1, w2, b2 = st["w1"], st["b1"], st["w2"], st["b2"]
    # torch group layout (D, Mr, M)/(D, M, Mr) -> kernel layout with trailing unit lane
    v1 = jnp.transpose(st["v1"], (0, 3, 2, 1))[..., None]     # (NB, M, Mr, D, 1)
    c1 = jnp.transpose(st["c1"], (0, 2, 1, 3))                # (NB, Mr, D, 1)
    v2 = jnp.transpose(st["v2"], (0, 3, 2, 1))[..., None]     # (NB, Mr, M, D, 1)
    c2 = jnp.transpose(st["c2"], (0, 2, 1, 3))                # (NB, M, D, 1)
    return wdw, off, w1, b1, w2, b2, v1, c1, v2, c2


def stage_forward(x, params_list):
    B, M, D, N = x.shape
    K = params_list[0]["w_dw"].shape[-1]
    HW = K // 2
    NB = len(params_list)
    C = M * D

    # Lane packing: each batch owns N_seg lanes with >= HW trailing zeros (the conv's
    # zero halo); L = B*N_seg is a multiple of 128 so stores are lane-dense/unmasked.
    unit = 128 // math.gcd(B, 128)
    N_seg = _round_up(N + HW, unit)
    L = B * N_seg

    xt = jnp.transpose(x, (1, 2, 0, 3))                            # (M, D, B, N)
    xt = jnp.pad(xt, ((0, 0), (0, 0), (0, 0), (0, N_seg - N)))
    xt = xt.reshape(M, D, L)

    # {0,1} valid-lane mask (applied once per block inside the kernel)
    valid = (jnp.arange(L, dtype=jnp.int32) % N_seg) < N
    mask = valid.astype(jnp.float32)[None, :]                      # (1, L)

    wdw, off, w1, b1, w2, b2, v1, c1, v2, c2 = _prep_stage_params(params_list)
    dff = w1.shape[2]
    Mr = v2.shape[1]

    # VMEM budget: input + carried activation + FFN intermediates + conv temporaries
    # + 2x (double-buffered) per-block weights, with headroom.
    act_b = 4 * L * (2 * M * D + M * dff + Mr * D + 2 * C)
    wt_b = 4 * (C * K + C + 2 * M * dff * D + M * dff + M * D
                + 2 * M * Mr * D + Mr * D + M * D)
    vmem_limit = int(min(64 * 2**20, max(32 * 2**20, 4 * act_b + 4 * wt_b)))

    def wspec(shape):                                   # per-block weight slice
        return pl.BlockSpec((None,) + shape,
                            lambda blk, _s=shape: (blk,) + (0,) * len(_s))

    def full(shape):                                    # whole array, constant block
        return pl.BlockSpec(shape, lambda blk, _s=shape: (0,) * len(_s))

    kernel = functools.partial(_stage_kernel, K=K)
    out_t = pl.pallas_call(
        kernel,
        out_shape=jax.ShapeDtypeStruct((M, D, L), jnp.float32),
        grid=(NB,),
        in_specs=[
            full((M, D, L)),                   # x  (constant block idx -> fetched once)
            full((1, L)),                      # gap mask
            wspec((C, K)), wspec((C, 1)),      # fused depthwise kernel / offset
            wspec((M, dff, D)), wspec((M, dff, 1)),
            wspec((M, D, dff)), wspec((M, D, 1)),
            wspec((M, Mr, D, 1)), wspec((Mr, D, 1)),
            wspec((Mr, M, D, 1)), wspec((M, D, 1)),
        ],
        out_specs=full((M, D, L)),             # constant block idx => resident VMEM carry
        compiler_params=pltpu.CompilerParams(
            dimension_semantics=("arbitrary",),
            vmem_limit_bytes=vmem_limit),
    )(xt, mask, wdw, off, w1, b1, w2, b2, v1, c1, v2, c2)

    out = out_t.reshape(M, D, B, N_seg)[..., :N]
    return jnp.transpose(out, (2, 0, 1, 3))                        # (B, M, D, N)


# ---------------------------------------------------------------------------
# Pure-JAX reference (same math, no Pallas) for the correctness check
# ---------------------------------------------------------------------------
def block_ref(x, p):
    B, M, D, N = x.shape
    C = M * D
    K = p["w_dw"].shape[1]
    xr = x.reshape(B, C, N)
    xp = jnp.pad(xr, ((0, 0), (0, 0), (K // 2, K // 2)))
    acc = jnp.zeros((B, C, N), jnp.float32)
    for k in range(K):
        acc = acc + p["w_dw"][None, :, k:k + 1] * xp[:, :, k:k + N]
    y = (acc + p["off_dw"][None, :, :]).reshape(B, M, D, N)
    h = jnp.einsum("mfd,bmdn->bmfn", p["w1"], y) + p["b1"][None]
    h = _gelu(h)
    z = jnp.einsum("mdf,bmfn->bmdn", p["w2"], h) + p["b2"][None]
    u = jnp.transpose(z, (0, 2, 1, 3))
    h2 = jnp.einsum("drm,bdmn->bdrn", p["v1"], u) + p["c1"][None]
    h2 = _gelu(h2)
    z2 = jnp.einsum("dmr,bdrn->bdmn", p["v2"], h2) + p["c2"][None]
    return x + jnp.transpose(z2, (0, 2, 1, 3))


def stage_ref(x, params_list):
    for p in params_list:
        x = block_ref(x, p)
    return x


# ---------------------------------------------------------------------------
# Deterministic synthetic parameters (one Block), with eval-mode BN fusion.
# ---------------------------------------------------------------------------
def init_block_params(key, M, D, ffn_ratio, Kl, Ks, eps=1e-5):
    assert Kl % 2 == 1 and Ks % 2 == 1 and Ks <= Kl
    C = M * D
    dff = D * ffn_ratio
    Mr = M * ffn_ratio
    keys = iter(jax.random.split(key, 32))

    def nrm(shape, scale=0.2):
        return scale * jax.random.normal(next(keys), shape, jnp.float32)

    def pos(shape):
        return jax.random.uniform(next(keys), shape, jnp.float32, 0.5, 1.5)

    # lkb_origin: depthwise conv (C,1,Kl) + BatchNorm1d(C)
    w_l = nrm((C, Kl))
    g_l, b_l, m_l, v_l = pos((C,)), nrm((C,)), nrm((C,)), pos((C,))
    # small_conv: depthwise conv (C,1,Ks) + BatchNorm1d(C)
    w_s = nrm((C, Ks))
    g_s, b_s, m_s, v_s = pos((C,)), nrm((C,)), nrm((C,)), pos((C,))
    # self.norm: BatchNorm1d(D)
    g_n, b_n, m_n, v_n = pos((D,)), nrm((D,)), nrm((D,)), pos((D,))

    # Fuse BN(eval) into the depthwise kernels (== get_equivalent_kernel_bias)
    sl = g_l / jnp.sqrt(v_l + eps)
    ss = g_s / jnp.sqrt(v_s + eps)
    pad = (Kl - Ks) // 2
    w_dw = w_l * sl[:, None] + jnp.pad(w_s * ss[:, None], ((0, 0), (pad, pad)))
    bias_dw = (b_l - m_l * sl) + (b_s - m_s * ss)
    # Fold BatchNorm1d(D) affine on top (channel c maps to BN channel c % D)
    sn = g_n / jnp.sqrt(v_n + eps)
    sh_n = b_n - m_n * sn
    s_row = jnp.tile(sn, M)
    sh_row = jnp.tile(sh_n, M)
    w_final = w_dw * s_row[:, None]
    off = (s_row * bias_dw + sh_row)[:, None]

    # ffn1: Conv1d(M*D -> M*dff, groups=M) then Conv1d(M*dff -> M*D, groups=M)
    w1, b1 = nrm((M, dff, D)), nrm((M, dff, 1))
    w2, b2 = nrm((M, D, dff)), nrm((M, D, 1))
    # ffn2: Conv1d(M*D -> M*dff, groups=D) then Conv1d(M*dff -> M*D, groups=D)
    v1, c1 = nrm((D, Mr, M)), nrm((D, Mr, 1))
    v2, c2 = nrm((D, M, Mr)), nrm((D, M, 1))

    return dict(w_dw=w_final, off_dw=off,
                w1=w1, b1=b1, w2=w2, b2=b2,
                v1=v1, c1=c1, v2=v2, c2=c2)


# TODO(synk): dropout (p=0.1) randomness and train-mode BatchNorm batch statistics are
#             not modeled; eval-mode semantics (identity dropout, running-stat BN fused
#             into the depthwise conv) are implemented instead.

if __name__ == "__main__":
    # x is (B, nvars, dmodel, N), matching Stage/Block.forward
    B, M, D, N = 2, 3, 8, 16
    ffn_ratio = 2
    num_blocks = 2
    large_size, small_size = 5, 3

    key = jax.random.PRNGKey(0)
    key, xkey = jax.random.split(key)
    x = jax.random.normal(xkey, (B, M, D, N), jnp.float32)

    params = []
    for _ in range(num_blocks):
        key, bkey = jax.random.split(key)
        params.append(init_block_params(bkey, M, D, ffn_ratio, large_size, small_size))

    stage = jax.jit(stage_forward)
    out = jax.block_until_ready(stage(x, params))

    ref = stage_ref(x, params)
    assert out.shape == x.shape
    max_err = float(jnp.max(jnp.abs(out - ref)))
    assert jnp.allclose(out, ref, atol=3e-2, rtol=3e-2), f"max abs err = {max_err}"
    print("KERNEL_OK")
</pallas_src>

<mosaic_0001>
module attributes {stable_mosaic.version = 11 : i64} {
  func.func @_stage_kernel(%arg0: i32, %arg1: memref<3x8x128xf32, #tpu.memory_space<vmem>>, %arg2: memref<1x128xf32, #tpu.memory_space<vmem>>, %arg3: memref<1x24x5xf32, #tpu.memory_space<vmem>>, %arg4: memref<1x24x1xf32, #tpu.memory_space<vmem>>, %arg5: memref<1x3x16x8xf32, #tpu.memory_space<vmem>>, %arg6: memref<1x3x16x1xf32, #tpu.memory_space<vmem>>, %arg7: memref<1x3x8x16xf32, #tpu.memory_space<vmem>>, %arg8: memref<1x3x8x1xf32, #tpu.memory_space<vmem>>, %arg9: memref<1x3x6x8x1xf32, #tpu.memory_space<vmem>>, %arg10: memref<1x6x8x1xf32, #tpu.memory_space<vmem>>, %arg11: memref<1x6x3x8x1xf32, #tpu.memory_space<vmem>>, %arg12: memref<1x3x8x1xf32, #tpu.memory_space<vmem>>, %arg13: memref<3x8x128xf32, #tpu.memory_space<vmem>>) attributes {dimension_semantics = [#tpu.dimension_semantics<arbitrary>], iteration_bounds = array<i64: 2>, scalar_prefetch = 0 : i64, scratch_operands = 0 : i64, tpu.core_type = #tpu.core_type<tc>, window_params = [{pipeline_mode = #tpu.pipeline_mode<synchronous>, transform_indices = @transform_0, window_bounds = array<i64: 3, 8, 128>}, {pipeline_mode = #tpu.pipeline_mode<synchronous>, transform_indices = @transform_1, window_bounds = array<i64: 1, 128>}, {transform_indices = @transform_2, window_bounds = array<i64: 1, 24, 5>}, {transform_indices = @transform_3, window_bounds = array<i64: 1, 24, 1>}, {transform_indices = @transform_4, window_bounds = array<i64: 1, 3, 16, 8>}, {transform_indices = @transform_5, window_bounds = array<i64: 1, 3, 16, 1>}, {transform_indices = @transform_6, window_bounds = array<i64: 1, 3, 8, 16>}, {transform_indices = @transform_7, window_bounds = array<i64: 1, 3, 8, 1>}, {transform_indices = @transform_8, window_bounds = array<i64: 1, 3, 6, 8, 1>}, {transform_indices = @transform_9, window_bounds = array<i64: 1, 6, 8, 1>}, {transform_indices = @transform_10, window_bounds = array<i64: 1, 6, 3, 8, 1>}, {transform_indices = @transform_11, window_bounds = array<i64: 1, 3, 8, 1>}, {pipeline_mode = #tpu.pipeline_mode<synchronous>, transform_indices = @transform_12, window_bounds = array<i64: 3, 8, 128>}]} {
    %c0_i32 = arith.constant 0 : i32
    %0 = arith.cmpi eq, %arg0, %c0_i32 : i32
    %1 = arith.extui %0 : i1 to i32
    %c0_i32_0 = arith.constant 0 : i32
    %2 = arith.cmpi ne, %1, %c0_i32_0 : i32
    scf.if %2 {
      %c0_57 = arith.constant 0 : index
      %c0_58 = arith.constant 0 : index
      %c0_59 = arith.constant 0 : index
      %165 = vector.load %arg1[%c0_57, %c0_58, %c0_59] : memref<3x8x128xf32, #tpu.memory_space<vmem>>, vector<3x8x128xf32>
      %c0_60 = arith.constant 0 : index
      %c0_61 = arith.constant 0 : index
      %c0_62 = arith.constant 0 : index
      %166 = vector.load %arg13[%c0_60, %c0_61, %c0_62] : memref<3x8x128xf32, #tpu.memory_space<vmem>>, vector<3x8x128xf32>
      tpu.vector_store %arg13[%c0_60, %c0_61, %c0_62], %165 {strides = array<i32>} : memref<3x8x128xf32, #tpu.memory_space<vmem>>, vector<3x8x128xf32>,
    } else {
    }
    %c0 = arith.constant 0 : index
    %c0_1 = arith.constant 0 : index
    %c0_2 = arith.constant 0 : index
    %3 = vector.load %arg13[%c0, %c0_1, %c0_2] : memref<3x8x128xf32, #tpu.memory_space<vmem>>, vector<3x8x128xf32>
    %4 = vector.shape_cast %3 : vector<3x8x128xf32> to vector<24x128xf32>
    %c0_3 = arith.constant 0 : index
    %c0_4 = arith.constant 0 : index
    %5 = vector.load %arg2[%c0_3, %c0_4] : memref<1x128xf32, #tpu.memory_space<vmem>>, vector<1x128xf32>
    %6 = vector.broadcast %5 : vector<1x128xf32> to vector<24x128xf32>
    %7 = arith.mulf %4, %6 : vector<24x128xf32>
    %c0_5 = arith.constant 0 : index
    %c0_6 = arith.constant 0 : index
    %c0_7 = arith.constant 0 : index
    %8 = vector.load %arg3[%c0_5, %c0_6, %c0_7] : memref<1x24x5xf32, #tpu.memory_space<vmem>>, vector<1x24x5xf32>
    %9 = vector.shape_cast %8 : vector<1x24x5xf32> to vector<24x5xf32>
    %10 = vector.extract_strided_slice %9 {offsets = [0, 2], sizes = [24, 1], strides = [1, 1]} : vector<24x5xf32> to vector<24x1xf32>
    %11 = vector.broadcast %10 : vector<24x1xf32> to vector<24x128xf32>
    %12 = arith.mulf %11, %7 : vector<24x128xf32>
    %13 = vector.extract_strided_slice %9 {offsets = [0, 0], sizes = [24, 1], strides = [1, 1]} : vector<24x5xf32> to vector<24x1xf32>
    %c2_i32 = arith.constant 2 : i32
    %14 = tpu.dynamic_rotate %7 by %c2_i32 dim 1 : vector<24x128xf32>, i32 -> vector<24x128xf32>
    %15 = vector.broadcast %13 : vector<24x1xf32> to vector<24x128xf32>
    %16 = arith.mulf %15, %14 : vector<24x128xf32>
    %17 = arith.addf %12, %16 : vector<24x128xf32>
    %18 = vector.extract_strided_slice %9 {offsets = [0, 1], sizes = [24, 1], strides = [1, 1]} : vector<24x5xf32> to vector<24x1xf32>
    %c1_i32 = arith.constant 1 : i32
    %19 = tpu.dynamic_rotate %7 by %c1_i32 dim 1 : vector<24x128xf32>, i32 -> vector<24x128xf32>
    %20 = vector.broadcast %18 : vector<24x1xf32> to vector<24x128xf32>
    %21 = arith.mulf %20, %19 : vector<24x128xf32>
    %22 = arith.addf %17, %21 : vector<24x128xf32>
    %23 = vector.extract_strided_slice %9 {offsets = [0, 3], sizes = [24, 1], strides = [1, 1]} : vector<24x5xf32> to vector<24x1xf32>
    %c127_i32 = arith.constant 127 : i32
    %24 = tpu.dynamic_rotate %7 by %c127_i32 dim 1 : vector<24x128xf32>, i32 -> vector<24x128xf32>
    %25 = vector.broadcast %23 : vector<24x1xf32> to vector<24x128xf32>
    %26 = arith.mulf %25, %24 : vector<24x128xf32>
    %27 = arith.addf %22, %26 : vector<24x128xf32>
    %28 = vector.extract_strided_slice %9 {offsets = [0, 4], sizes = [24, 1], strides = [1, 1]} : vector<24x5xf32> to vector<24x1xf32>
    %c126_i32 = arith.constant 126 : i32
    %29 = tpu.dynamic_rotate %7 by %c126_i32 dim 1 : vector<24x128xf32>, i32 -> vector<24x128xf32>
    %30 = vector.broadcast %28 : vector<24x1xf32> to vector<24x128xf32>
    %31 = arith.mulf %30, %29 : vector<24x128xf32>
    %32 = arith.addf %27, %31 : vector<24x128xf32>
    %c0_8 = arith.constant 0 : index
    %c0_9 = arith.constant 0 : index
    %c0_10 = arith.constant 0 : index
    %33 = vector.load %arg4[%c0_8, %c0_9, %c0_10] : memref<1x24x1xf32, #tpu.memory_space<vmem>>, vector<1x24x1xf32>
    %34 = vector.shape_cast %33 : vector<1x24x1xf32> to vector<24x1xf32>
    %35 = vector.broadcast %34 : vector<24x1xf32> to vector<24x128xf32>
    %36 = arith.addf %32, %35 : vector<24x128xf32>
    %37 = vector.shape_cast %36 : vector<24x128xf32> to vector<3x8x128xf32>
    %c0_11 = arith.constant 0 : index
    %c0_12 = arith.constant 0 : index
    %c0_13 = arith.constant 0 : index
    %c0_14 = arith.constant 0 : index
    %38 = vector.load %arg5[%c0_11, %c0_12, %c0_13, %c0_14] : memref<1x3x16x8xf32, #tpu.memory_space<vmem>>, vector<1x3x16x8xf32>
    %39 = vector.shape_cast %38 : vector<1x3x16x8xf32> to vector<3x16x8xf32>
    "tpu.trace_start"() <{level = 10 : i32, message = "mfd,mdl->mfl"}> : () -> ()
    %cst = arith.constant dense<0.000000e+00> : vector<3x16x128xf32>
    %40 = tpu.matmul %39, %37, %cst {dimension_numbers = #tpu.dot_dimension_numbers<[2], [1], [1], [2], [0, 0, 0, 1, 1, 2], [0], [0]>} : vector<3x16x8xf32>, vector<3x8x128xf32>, vector<3x16x128xf32> -> vector<3x16x128xf32>
    "tpu.trace_stop"() : () -> ()
    %c0_15 = arith.constant 0 : index
    %c0_16 = arith.constant 0 : index
    %c0_17 = arith.constant 0 : index
    %c0_18 = arith.constant 0 : index
    %41 = vector.load %arg6[%c0_15, %c0_16, %c0_17, %c0_18] : memref<1x3x16x1xf32, #tpu.memory_space<vmem>>, vector<1x3x16x1xf32>
    %42 = vector.shape_cast %41 : vector<1x3x16x1xf32> to vector<3x16x1xf32>
    %43 = vector.broadcast %42 : vector<3x16x1xf32> to vector<3x16x128xf32>
    %44 = arith.addf %40, %43 : vector<3x16x128xf32>
    %cst_19 = arith.constant 5.000000e-01 : f32
    %45 = vector.broadcast %cst_19 : f32 to vector<3x16x128xf32>
    %46 = arith.mulf %45, %44 : vector<3x16x128xf32>
    %cst_20 = arith.constant 0.707106769 : f32
    %47 = vector.broadcast %cst_20 : f32 to vector<3x16x128xf32>
    %48 = arith.mulf %44, %47 : vector<3x16x128xf32>
    %49 = math.erf %48 : vector<3x16x128xf32>
    %cst_21 = arith.constant 1.000000e+00 : f32
    %50 = vector.broadcast %cst_21 : f32 to vector<3x16x128xf32>
    %51 = arith.addf %50, %49 : vector<3x16x128xf32>
    %52 = arith.mulf %46, %51 : vector<3x16x128xf32>
    %c0_22 = arith.constant 0 : index
    %c0_23 = arith.constant 0 : index
    %c0_24 = arith.constant 0 : index
    %c0_25 = arith.constant 0 : index
    %53 = vector.load %arg7[%c0_22, %c0_23, %c0_24, %c0_25] : memref<1x3x8x16xf32, #tpu.memory_space<vmem>>, vector<1x3x8x16xf32>
    %54 = vector.shape_cast %53 : vector<1x3x8x16xf32> to vector<3x8x16xf32>
    "tpu.trace_start"() <{level = 10 : i32, message = "mdf,mfl->mdl"}> : () -> ()
    %cst_26 = arith.constant dense<0.000000e+00> : vector<3x8x128xf32>
    %55 = tpu.matmul %54, %52, %cst_26 {dimension_numbers = #tpu.dot_dimension_numbers<[2], [1], [1], [2], [0, 0, 0, 1, 1, 2], [0], [0]>} : vector<3x8x16xf32>, vector<3x16x128xf32>, vector<3x8x128xf32> -> vector<3x8x128xf32>
    "tpu.trace_stop"() : () -> ()
    %c0_27 = arith.constant 0 : index
    %c0_28 = arith.constant 0 : index
    %c0_29 = arith.constant 0 : index
    %c0_30 = arith.constant 0 : index
    %56 = vector.load %arg8[%c0_27, %c0_28, %c0_29, %c0_30] : memref<1x3x8x1xf32, #tpu.memory_space<vmem>>, vector<1x3x8x1xf32>
    %57 = vector.shape_cast %56 : vector<1x3x8x1xf32> to vector<3x8x1xf32>
    %58 = vector.broadcast %57 : vector<3x8x1xf32> to vector<3x8x128xf32>
    %59 = arith.addf %55, %58 : vector<3x8x128xf32>
    %c0_31 = arith.constant 0 : index
    %c0_32 = arith.constant 0 : index
    %c0_33 = arith.constant 0 : index
    %c0_34 = arith.constant 0 : index
    %c0_35 = arith.constant 0 : index
    %60 = vector.load %arg9[%c0_31, %c0_32, %c0_33, %c0_34, %c0_35] : memref<1x3x6x8x1xf32, #tpu.memory_space<vmem>>, vector<1x3x6x8x1xf32>
    %61 = vector.shape_cast %60 : vector<1x3x6x8x1xf32> to vector<3x6x8x1xf32>
    %c0_36 = arith.constant 0 : index
    %c0_37 = arith.constant 0 : index
    %c0_38 = arith.constant 0 : index
    %c0_39 = arith.constant 0 : index
    %c0_40 = arith.constant 0 : index
    %62 = vector.load %arg11[%c0_36, %c0_37, %c0_38, %c0_39, %c0_40] : memref<1x6x3x8x1xf32, #tpu.memory_space<vmem>>, vector<1x6x3x8x1xf32>
    %63 = vector.shape_cast %62 : vector<1x6x3x8x1xf32> to vector<6x3x8x1xf32>
    %cst_41 = arith.constant 0.000000e+00 : f32
    %64 = vector.broadcast %cst_41 : f32 to vector<6x8x128xf32>
    %65 = vector.extract_strided_slice %61 {offsets = [0, 0, 0, 0], sizes = [1, 6, 8, 1], strides = [1, 1, 1, 1]} : vector<3x6x8x1xf32> to vector<1x6x8x1xf32>
    %66 = vector.shape_cast %65 : vector<1x6x8x1xf32> to vector<6x8x1xf32>
    %67 = vector.extract_strided_slice %59 {offsets = [0, 0, 0], sizes = [1, 8, 128], strides = [1, 1, 1]} : vector<3x8x128xf32> to vector<1x8x128xf32>
    %68 = vector.shape_cast %67 : vector<1x8x128xf32> to vector<8x128xf32>
    %69 = vector.shape_cast %68 : vector<8x128xf32> to vector<1x8x128xf32>
    %70 = vector.broadcast %66 : vector<6x8x1xf32> to vector<6x8x128xf32>
    %71 = vector.broadcast %69 : vector<1x8x128xf32> to vector<6x8x128xf32>
    %72 = arith.mulf %70, %71 : vector<6x8x128xf32>
    %73 = arith.addf %64, %72 : vector<6x8x128xf32>
    %74 = vector.extract_strided_slice %61 {offsets = [1, 0, 0, 0], sizes = [1, 6, 8, 1], strides = [1, 1, 1, 1]} : vector<3x6x8x1xf32> to vector<1x6x8x1xf32>
    %75 = vector.shape_cast %74 : vector<1x6x8x1xf32> to vector<6x8x1xf32>
    %76 = vector.extract_strided_slice %59 {offsets = [1, 0, 0], sizes = [1, 8, 128], strides = [1, 1, 1]} : vector<3x8x128xf32> to vector<1x8x128xf32>
    %77 = vector.shape_cast %76 : vector<1x8x128xf32> to vector<8x128xf32>
    %78 = vector.shape_cast %77 : vector<8x128xf32> to vector<1x8x128xf32>
    %79 = vector.broadcast %75 : vector<6x8x1xf32> to vector<6x8x128xf32>
    %80 = vector.broadcast %78 : vector<1x8x128xf32> to vector<6x8x128xf32>
    %81 = arith.mulf %79, %80 : vector<6x8x128xf32>
    %82 = arith.addf %73, %81 : vector<6x8x128xf32>
    %83 = vector.extract_strided_slice %61 {offsets = [2, 0, 0, 0], sizes = [1, 6, 8, 1], strides = [1, 1, 1, 1]} : vector<3x6x8x1xf32> to vector<1x6x8x1xf32>
    %84 = vector.shape_cast %83 : vector<1x6x8x1xf32> to vector<6x8x1xf32>
    %85 = vector.extract_strided_slice %59 {offsets = [2, 0, 0], sizes = [1, 8, 128], strides = [1, 1, 1]} : vector<3x8x128xf32> to vector<1x8x128xf32>
    %86 = vector.shape_cast %85 : vector<1x8x128xf32> to vector<8x128xf32>
    %87 = vector.shape_cast %86 : vector<8x128xf32> to vector<1x8x128xf32>
    %88 = vector.broadcast %84 : vector<6x8x1xf32> to vector<6x8x128xf32>
    %89 = vector.broadcast %87 : vector<1x8x128xf32> to vector<6x8x128xf32>
    %90 = arith.mulf %88, %89 : vector<6x8x128xf32>
    %91 = arith.addf %82, %90 : vector<6x8x128xf32>
    %c0_42 = arith.constant 0 : index
    %c0_43 = arith.constant 0 : index
    %c0_44 = arith.constant 0 : index
    %c0_45 = arith.constant 0 : index
    %92 = vector.load %arg10[%c0_42, %c0_43, %c0_44, %c0_45] : memref<1x6x8x1xf32, #tpu.memory_space<vmem>>, vector<1x6x8x1xf32>
    %93 = vector.shape_cast %92 : vector<1x6x8x1xf32> to vector<6x8x1xf32>
    %94 = vector.broadcast %93 : vector<6x8x1xf32> to vector<6x8x128xf32>
    %95 = arith.addf %91, %94 : vector<6x8x128xf32>
    %cst_46 = arith.constant 5.000000e-01 : f32
    %96 = vector.broadcast %cst_46 : f32 to vector<6x8x128xf32>
    %97 = arith.mulf %96, %95 : vector<6x8x128xf32>
    %cst_47 = arith.constant 0.707106769 : f32
    %98 = vector.broadcast %cst_47 : f32 to vector<6x8x128xf32>
    %99 = arith.mulf %95, %98 : vector<6x8x128xf32>
    %100 = math.erf %99 : vector<6x8x128xf32>
    %cst_48 = arith.constant 1.000000e+00 : f32
    %101 = vector.broadcast %cst_48 : f32 to vector<6x8x128xf32>
    %102 = arith.addf %101, %100 : vector<6x8x128xf32>
    %103 = arith.mulf %97, %102 : vector<6x8x128xf32>
    %cst_49 = arith.constant 0.000000e+00 : f32
    %104 = vector.broadcast %cst_49 : f32 to vector<3x8x128xf32>
    %105 = vector.extract_strided_slice %63 {offsets = [0, 0, 0, 0], sizes = [1, 3, 8, 1], strides = [1, 1, 1, 1]} : vector<6x3x8x1xf32> to vector<1x3x8x1xf32>
    %106 = vector.shape_cast %105 : vector<1x3x8x1xf32> to vector<3x8x1xf32>
    %107 = vector.extract_strided_slice %103 {offsets = [0, 0, 0], sizes = [1, 8, 128], strides = [1, 1, 1]} : vector<6x8x128xf32> to vector<1x8x128xf32>
    %108 = vector.shape_cast %107 : vector<1x8x128xf32> to vector<8x128xf32>
    %109 = vector.shape_cast %108 : vector<8x128xf32> to vector<1x8x128xf32>
    %110 = vector.broadcast %106 : vector<3x8x1xf32> to vector<3x8x128xf32>
    %111 = vector.broadcast %109 : vector<1x8x128xf32> to vector<3x8x128xf32>
    %112 = arith.mulf %110, %111 : vector<3x8x128xf32>
    %113 = arith.addf %104, %112 : vector<3x8x128xf32>
    %114 = vector.extract_strided_slice %63 {offsets = [1, 0, 0, 0], sizes = [1, 3, 8, 1], strides = [1, 1, 1, 1]} : vector<6x3x8x1xf32> to vector<1x3x8x1xf32>
    %115 = vector.shape_cast %114 : vector<1x3x8x1xf32> to vector<3x8x1xf32>
    %116 = vector.extract_strided_slice %103 {offsets = [1, 0, 0], sizes = [1, 8, 128], strides = [1, 1, 1]} : vector<6x8x128xf32> to vector<1x8x128xf32>
    %117 = vector.shape_cast %116 : vector<1x8x128xf32> to vector<8x128xf32>
    %118 = vector.shape_cast %117 : vector<8x128xf32> to vector<1x8x128xf32>
    %119 = vector.broadcast %115 : vector<3x8x1xf32> to vector<3x8x128xf32>
    %120 = vector.broadcast %118 : vector<1x8x128xf32> to vector<3x8x128xf32>
    %121 = arith.mulf %119, %120 : vector<3x8x128xf32>
    %122 = arith.addf %113, %121 : vector<3x8x128xf32>
    %123 = vector.extract_strided_slice %63 {offsets = [2, 0, 0, 0], sizes = [1, 3, 8, 1], strides = [1, 1, 1, 1]} : vector<6x3x8x1xf32> to vector<1x3x8x1xf32>
    %124 = vector.shape_cast %123 : vector<1x3x8x1xf32> to vector<3x8x1xf32>
    %125 = vector.extract_strided_slice %103 {offsets = [2, 0, 0], sizes = [1, 8, 128], strides = [1, 1, 1]} : vector<6x8x128xf32> to vector<1x8x128xf32>
    %126 = vector.shape_cast %125 : vector<1x8x128xf32> to vector<8x128xf32>
    %127 = vector.shape_cast %126 : vector<8x128xf32> to vector<1x8x128xf32>
    %128 = vector.broadcast %124 : vector<3x8x1xf32> to vector<3x8x128xf32>
    %129 = vector.broadcast %127 : vector<1x8x128xf32> to vector<3x8x128xf32>
    %130 = arith.mulf %128, %129 : vector<3x8x128xf32>
    %131 = arith.addf %122, %130 : vector<3x8x128xf32>
    %132 = vector.extract_strided_slice %63 {offsets = [3, 0, 0, 0], sizes = [1, 3, 8, 1], strides = [1, 1, 1, 1]} : vector<6x3x8x1xf32> to vector<1x3x8x1xf32>
    %133 = vector.shape_cast %132 : vector<1x3x8x1xf32> to vector<3x8x1xf32>
    %134 = vector.extract_strided_slice %103 {offsets = [3, 0, 0], sizes = [1, 8, 128], strides = [1, 1, 1]} : vector<6x8x128xf32> to vector<1x8x128xf32>
    %135 = vector.shape_cast %134 : vector<1x8x128xf32> to vector<8x128xf32>
    %136 = vector.shape_cast %135 : vector<8x128xf32> to vector<1x8x128xf32>
    %137 = vector.broadcast %133 : vector<3x8x1xf32> to vector<3x8x128xf32>
    %138 = vector.broadcast %136 : vector<1x8x128xf32> to vector<3x8x128xf32>
    %139 = arith.mulf %137, %138 : vector<3x8x128xf32>
    %140 = arith.addf %131, %139 : vector<3x8x128xf32>
    %141 = vector.extract_strided_slice %63 {offsets = [4, 0, 0, 0], sizes = [1, 3, 8, 1], strides = [1, 1, 1, 1]} : vector<6x3x8x1xf32> to vector<1x3x8x1xf32>
    %142 = vector.shape_cast %141 : vector<1x3x8x1xf32> to vector<3x8x1xf32>
    %143 = vector.extract_strided_slice %103 {offsets = [4, 0, 0], sizes = [1, 8, 128], strides = [1, 1, 1]} : vector<6x8x128xf32> to vector<1x8x128xf32>
    %144 = vector.shape_cast %143 : vector<1x8x128xf32> to vector<8x128xf32>
    %145 = vector.shape_cast %144 : vector<8x128xf32> to vector<1x8x128xf32>
    %146 = vector.broadcast %142 : vector<3x8x1xf32> to vector<3x8x128xf32>
    %147 = vector.broadcast %145 : vector<1x8x128xf32> to vector<3x8x128xf32>
    %148 = arith.mulf %146, %147 : vector<3x8x128xf32>
    %149 = arith.addf %140, %148 : vector<3x8x128xf32>
    %150 = vector.extract_strided_slice %63 {offsets = [5, 0, 0, 0], sizes = [1, 3, 8, 1], strides = [1, 1, 1, 1]} : vector<6x3x8x1xf32> to vector<1x3x8x1xf32>
    %151 = vector.shape_cast %150 : vector<1x3x8x1xf32> to vector<3x8x1xf32>
    %152 = vector.extract_strided_slice %103 {offsets = [5, 0, 0], sizes = [1, 8, 128], strides = [1, 1, 1]} : vector<6x8x128xf32> to vector<1x8x128xf32>
    %153 = vector.shape_cast %152 : vector<1x8x128xf32> to vector<8x128xf32>
    %154 = vector.shape_cast %153 : vector<8x128xf32> to vector<1x8x128xf32>
    %155 = vector.broadcast %151 : vector<3x8x1xf32> to vector<3x8x128xf32>
    %156 = vector.broadcast %154 : vector<1x8x128xf32> to vector<3x8x128xf32>
    %157 = arith.mulf %155, %156 : vector<3x8x128xf32>
    %158 = arith.addf %149, %157 : vector<3x8x128xf32>
    %159 = arith.addf %3, %158 : vector<3x8x128xf32>
    %c0_50 = arith.constant 0 : index
    %c0_51 = arith.constant 0 : index
    %c0_52 = arith.constant 0 : index
    %c0_53 = arith.constant 0 : index
    %160 = vector.load %arg12[%c0_50, %c0_51, %c0_52, %c0_53] : memref<1x3x8x1xf32, #tpu.memory_space<vmem>>, vector<1x3x8x1xf32>
    %161 = vector.shape_cast %160 : vector<1x3x8x1xf32> to vector<3x8x1xf32>
    %162 = vector.broadcast %161 : vector<3x8x1xf32> to vector<3x8x128xf32>
    %163 = arith.addf %159, %162 : vector<3x8x128xf32>
    %c0_54 = arith.constant 0 : index
    %c0_55 = arith.constant 0 : index
    %c0_56 = arith.constant 0 : index
    %164 = vector.load %arg13[%c0_54, %c0_55, %c0_56] : memref<3x8x128xf32, #tpu.memory_space<vmem>>, vector<3x8x128xf32>
    tpu.vector_store %arg13[%c0_54, %c0_55, %c0_56], %163 {strides = array<i32>} : memref<3x8x128xf32, #tpu.memory_space<vmem>>, vector<3x8x128xf32>,
    return
  }
  func.func @transform_0(%arg0: i32) -> (i32, i32, i32) {
    %c0_i32 = arith.constant 0 : i32
    %c0_i32_0 = arith.constant 0 : i32
    %c0_i32_1 = arith.constant 0 : i32
    %c0_i32_2 = arith.constant 0 : i32
    return %c0_i32, %c0_i32_0, %c0_i32_1 : i32, i32, i32
  }
  func.func @transform_1(%arg0: i32) -> (i32, i32) {
    %c0_i32 = arith.constant 0 : i32
    %c0_i32_0 = arith.constant 0 : i32
    %c0_i32_1 = arith.constant 0 : i32
    return %c0_i32, %c0_i32_0 : i32, i32
  }
  func.func @transform_2(%arg0: i32) -> (i32, i32, i32) {
    %c0_i32 = arith.constant 0 : i32
    %c0_i32_0 = arith.constant 0 : i32
    %c0_i32_1 = arith.constant 0 : i32
    return %arg0, %c0_i32, %c0_i32_0 : i32, i32, i32
  }
  func.func @transform_3(%arg0: i32) -> (i32, i32, i32) {
    %c0_i32 = arith.constant 0 : i32
    %c0_i32_0 = arith.constant 0 : i32
    %c0_i32_1 = arith.constant 0 : i32
    return %arg0, %c0_i32, %c0_i32_0 : i32, i32, i32
  }
  func.func @transform_4(%arg0: i32) -> (i32, i32, i32, i32) {
    %c0_i32 = arith.constant 0 : i32
    %c0_i32_0 = arith.constant 0 : i32
    %c0_i32_1 = arith.constant 0 : i32
    %c0_i32_2 = arith.constant 0 : i32
    return %arg0, %c0_i32, %c0_i32_0, %c0_i32_1 : i32, i32, i32, i32
  }
  func.func @transform_5(%arg0: i32) -> (i32, i32, i32, i32) {
    %c0_i32 = arith.constant 0 : i32
    %c0_i32_0 = arith.constant 0 : i32
    %c0_i32_1 = arith.constant 0 : i32
    %c0_i32_2 = arith.constant 0 : i32
    return %arg0, %c0_i32, %c0_i32_0, %c0_i32_1 : i32, i32, i32, i32
  }
  func.func @transform_6(%arg0: i32) -> (i32, i32, i32, i32) {
    %c0_i32 = arith.constant 0 : i32
    %c0_i32_0 = arith.constant 0 : i32
    %c0_i32_1 = arith.constant 0 : i32
    %c0_i32_2 = arith.constant 0 : i32
    return %arg0, %c0_i32, %c0_i32_0, %c0_i32_1 : i32, i32, i32, i32
  }
  func.func @transform_7(%arg0: i32) -> (i32, i32, i32, i32) {
    %c0_i32 = arith.constant 0 : i32
    %c0_i32_0 = arith.constant 0 : i32
    %c0_i32_1 = arith.constant 0 : i32
    %c0_i32_2 = arith.constant 0 : i32
    return %arg0, %c0_i32, %c0_i32_0, %c0_i32_1 : i32, i32, i32, i32
  }
  func.func @transform_8(%arg0: i32) -> (i32, i32, i32, i32, i32) {
    %c0_i32 = arith.constant 0 : i32
    %c0_i32_0 = arith.constant 0 : i32
    %c0_i32_1 = arith.constant 0 : i32
    %c0_i32_2 = arith.constant 0 : i32
    %c0_i32_3 = arith.constant 0 : i32
    return %arg0, %c0_i32, %c0_i32_0, %c0_i32_1, %c0_i32_2 : i32, i32, i32, i32, i32
  }
  func.func @transform_9(%arg0: i32) -> (i32, i32, i32, i32) {
    %c0_i32 = arith.constant 0 : i32
    %c0_i32_0 = arith.constant 0 : i32
    %c0_i32_1 = arith.constant 0 : i32
    %c0_i32_2 = arith.constant 0 : i32
    return %arg0, %c0_i32, %c0_i32_0, %c0_i32_1 : i32, i32, i32, i32
  }
  func.func @transform_10(%arg0: i32) -> (i32, i32, i32, i32, i32) {
    %c0_i32 = arith.constant 0 : i32
    %c0_i32_0 = arith.constant 0 : i32
    %c0_i32_1 = arith.constant 0 : i32
    %c0_i32_2 = arith.constant 0 : i32
    %c0_i32_3 = arith.constant 0 : i32
    return %arg0, %c0_i32, %c0_i32_0, %c0_i32_1, %c0_i32_2 : i32, i32, i32, i32, i32
  }
  func.func @transform_11(%arg0: i32) -> (i32, i32, i32, i32) {
    %c0_i32 = arith.constant 0 : i32
    %c0_i32_0 = arith.constant 0 : i32
    %c0_i32_1 = arith.constant 0 : i32
    %c0_i32_2 = arith.constant 0 : i32
    return %arg0, %c0_i32, %c0_i32_0, %c0_i32_1 : i32, i32, i32, i32
  }
  func.func @transform_12(%arg0: i32) -> (i32, i32, i32) {
    %c0_i32 = arith.constant 0 : i32
    %c0_i32_0 = arith.constant 0 : i32
    %c0_i32_1 = arith.constant 0 : i32
    %c0_i32_2 = arith.constant 0 : i32
    return %c0_i32, %c0_i32_0, %c0_i32_1 : i32, i32, i32
  }
}

</mosaic_0001>

<llo_original>
// kernel: stage_forward.1
$region0: #{stage_forward.1}
  #allocation0 [shape = 'u32[]', space=smem, size = 0x4, offset = 0x4, fixed_abs, tag = 'smem constant byte address 0x4 - core index']
  #allocation1 [shape = 'u32[144,128]{1,0:T(1,128)}', space=vmem, size = 0x12000, scoped, tag = 'internal scratch']
  %s0 = inlined_call_operand.vmem [shape: f32[3,8,128], index: 0, kind: input, shape index: {}]
  %s1 = inlined_call_operand.vmem [shape: f32[1,128], index: 1, kind: input, shape index: {}]
  %s2 = inlined_call_operand.vmem [shape: f32[2,24,5], index: 2, kind: input, shape index: {}]
  %s3 = inlined_call_operand.vmem [shape: f32[2,24,1], index: 3, kind: input, shape index: {}]
  %s4 = inlined_call_operand.vmem [shape: f32[2,3,16,8], index: 4, kind: input, shape index: {}]
  %s5 = inlined_call_operand.vmem [shape: f32[2,3,16,1], index: 5, kind: input, shape index: {}]
  %s6 = inlined_call_operand.vmem [shape: f32[2,3,8,16], index: 6, kind: input, shape index: {}]
  %s7 = inlined_call_operand.vmem [shape: f32[2,3,8,1], index: 7, kind: input, shape index: {}]
  %s8 = inlined_call_operand.vmem [shape: f32[2,3,6,8,1], index: 8, kind: input, shape index: {}]
  %s9 = inlined_call_operand.vmem [shape: f32[2,6,8,1], index: 9, kind: input, shape index: {}]
  %s10 = inlined_call_operand.vmem [shape: f32[2,6,3,8,1], index: 10, kind: input, shape index: {}]
  %s11 = inlined_call_operand.vmem [shape: f32[2,3,8,1], index: 11, kind: input, shape index: {}]
  %s12 = inlined_call_operand.vmem [shape: f32[3,8,128], index: 12, kind: output, shape index: {}]
  %s13 = sld [smem:[#allocation0]]
  $region85: #{stage_forward.1} parent=0
    _
  %s15 = ssub.s32 1, %s13
  %s16 = scalar_select 0, %s15, %s13
  loop: start=0, step=1, limit=4
  $region2: #{stage_forward.1} parent=0 // loop_pre_header
    _
  $region3: #{stage_forward.1} parent=0 // loop_header
    %s18 = sphi 0, %s22
    %p19 = scmp.ge.s32.totalorder %s18, 4
    %s26 = sphi 0, %s26
    %s28 = sphi 0, %s26
    %s29 = sphi 0, %s28
    %s43 = sphi 0, %s29
    %s47 = sphi 0, %s47
    %s49 = sphi 0, %s47
    %s50 = sphi 0, %s49
    %s64 = sphi 0, %s50
    %s70 = sphi 0, %s72
    %s73 = sphi 0, %s70
    %s74 = sphi 0, %s73
    %s90 = sphi 0, %s74
    %s96 = sphi 0, %s98
    %s99 = sphi 0, %s96
    %s100 = sphi 0, %s99
    %s116 = sphi 0, %s100
    %s122 = sphi 0, %s124
    %s125 = sphi 0, %s122
    %s126 = sphi 0, %s125
    %s142 = sphi 0, %s126
    %s148 = sphi 0, %s150
    %s151 = sphi 0, %s148
    %s152 = sphi 0, %s151
    %s168 = sphi 0, %s152
    %s174 = sphi 0, %s176
    %s177 = sphi 0, %s174
    %s178 = sphi 0, %s177
    %s194 = sphi 0, %s178
    %s200 = sphi 0, %s202
    %s203 = sphi 0, %s200
    %s204 = sphi 0, %s203
    %s220 = sphi 0, %s204
    %s226 = sphi 0, %s228
    %s229 = sphi 0, %s226
    %s230 = sphi 0, %s229
    %s246 = sphi 0, %s230
    %s252 = sphi 0, %s254
    %s255 = sphi 0, %s252
    %s256 = sphi 0, %s255
    %s272 = sphi 0, %s256
    %s278 = sphi 0, %s280
    %s281 = sphi 0, %s278
    %s282 = sphi 0, %s281
    %s298 = sphi 0, %s282
    %s304 = sphi 0, %s306
    %s307 = sphi 0, %s304
    %s308 = sphi 0, %s307
    %s324 = sphi 0, %s308
    %s328 = sphi 0, %s328
    %s330 = sphi 0, %s328
    %s331 = sphi 0, %s330
    %s345 = sphi 0, %s331
  $region4: #{stage_forward.1} parent=0 // loop_header_branch
    %21 = sbr.rel (%p19) target = $region8
  $region5: #{stage_forward.1} parent=0 // loop_body
    %s23 = ssub.s32 %s18, 1
    %s24 = ssub.s32 %s18, 2
    %s25 = sadd.s32 %s18, 1
    %s27 = sadd.s32 %s26, 1
    %p30 = scmp.eq.s32.totalorder %s18, 1
    %p31 = scmp.ne.s32.totalorder %s26, %s28
    %p32 = scmp.eq.s32.totalorder %s18, 0
    %p33 = por %p31, %p32
    %p34 = scmp.ne.s32.totalorder %s26, %s28
    %p35 = scmp.eq.s32.totalorder %s23, 1
    %p36 = por %p34, %p35
    %p37 = scmp.ne.s32.totalorder %s28, %s29
    %p38 = scmp.eq.s32.totalorder %s23, 0
    %p39 = por %p37, %p38
    %p40 = scmp.ne.s32.totalorder %s28, %s29
    %p41 = scmp.eq.s32.totalorder %s24, 1
    %p42 = por %p40, %p41
    %p44 = scmp.ne.s32.totalorder %s29, %s43
    %p45 = scmp.eq.s32.totalorder %s24, 0
    %p46 = por %p44, %p45
    %s48 = sadd.s32 %s47, 1
    %p51 = scmp.eq.s32.totalorder %s18, 1
    %p52 = scmp.ne.s32.totalorder %s47, %s49
    %p53 = scmp.eq.s32.totalorder %s18, 0
    %p54 = por %p52, %p53
    %p55 = scmp.ne.s32.totalorder %s47, %s49
    %p56 = scmp.eq.s32.totalorder %s23, 1
    %p57 = por %p55, %p56
    %p58 = scmp.ne.s32.totalorder %s49, %s50
    %p59 = scmp.eq.s32.totalorder %s23, 0
    %p60 = por %p58, %p59
    %p61 = scmp.ne.s32.totalorder %s49, %s50
    %p62 = scmp.eq.s32.totalorder %s24, 1
    %p63 = por %p61, %p62
    %p65 = scmp.ne.s32.totalorder %s50, %s64
    %p66 = scmp.eq.s32.totalorder %s24, 0
    %p67 = por %p65, %p66
    %s68 = ssub.s32 %s18, %s25
    %p69 = scmp.eq.s32.totalorder %s68, 0
    %s71 = sadd.s32 %s70, 1
    %s72 = scalar_select %p69, %s70, %s71
    %p75 = pneg %p69
    %p76 = scmp.eq.s32.totalorder %s18, 1
    %p77 = por %p75, %p76
    %p78 = scmp.ne.s32.totalorder %s70, %s73
    %p79 = scmp.eq.s32.totalorder %s18, 0
    %p80 = por %p78, %p79
    %p81 = scmp.ne.s32.totalorder %s70, %s73
    %p82 = scmp.eq.s32.totalorder %s23, 1
    %p83 = por %p81, %p82
    %p84 = scmp.ne.s32.totalorder %s73, %s74
    %p85 = scmp.eq.s32.totalorder %s23, 0
    %p86 = por %p84, %p85
    %p87 = scmp.ne.s32.totalorder %s73, %s74
    %p88 = scmp.eq.s32.totalorder %s24, 1
    %p89 = por %p87, %p88
    %p91 = scmp.ne.s32.totalorder %s74, %s90
    %p92 = scmp.eq.s32.totalorder %s24, 0
    %p93 = por %p91, %p92
    %s94 = ssub.s32 %s18, %s25
    %p95 = scmp.eq.s32.totalorder %s94, 0
    %s97 = sadd.s32 %s96, 1
    %s98 = scalar_select %p95, %s96, %s97
    %p101 = pneg %p95
    %p102 = scmp.eq.s32.totalorder %s18, 1
    %p103 = por %p101, %p102
    %p104 = scmp.ne.s32.totalorder %s96, %s99
    %p105 = scmp.eq.s32.totalorder %s18, 0
    %p106 = por %p104, %p105
    %p107 = scmp.ne.s32.totalorder %s96, %s99
    %p108 = scmp.eq.s32.totalorder %s23, 1
    %p109 = por %p107, %p108
    %p110 = scmp.ne.s32.totalorder %s99, %s100
    %p111 = scmp.eq.s32.totalorder %s23, 0
    %p112 = por %p110, %p111
    %p113 = scmp.ne.s32.totalorder %s99, %s100
    %p114 = scmp.eq.s32.totalorder %s24, 1
    %p115 = por %p113, %p114
    %p117 = scmp.ne.s32.totalorder %s100, %s116
    %p118 = scmp.eq.s32.totalorder %s24, 0
    %p119 = por %p117, %p118
    %s120 = ssub.s32 %s18, %s25
    %p121 = scmp.eq.s32.totalorder %s120, 0
    %s123 = sadd.s32 %s122, 1
    %s124 = scalar_select %p121, %s122, %s123
    %p127 = pneg %p121
    %p128 = scmp.eq.s32.totalorder %s18, 1
    %p129 = por %p127, %p128
    %p130 = scmp.ne.s32.totalorder %s122, %s125
    %p131 = scmp.eq.s32.totalorder %s18, 0
    %p132 = por %p130, %p131
    %p133 = scmp.ne.s32.totalorder %s122, %s125
    %p134 = scmp.eq.s32.totalorder %s23, 1
    %p135 = por %p133, %p134
    %p136 = scmp.ne.s32.totalorder %s125, %s126
    %p137 = scmp.eq.s32.totalorder %s23, 0
    %p138 = por %p136, %p137
    %p139 = scmp.ne.s32.totalorder %s125, %s126
    %p140 = scmp.eq.s32.totalorder %s24, 1
    %p141 = por %p139, %p140
    %p143 = scmp.ne.s32.totalorder %s126, %s142
    %p144 = scmp.eq.s32.totalorder %s24, 0
    %p145 = por %p143, %p144
    %s146 = ssub.s32 %s18, %s25
    %p147 = scmp.eq.s32.totalorder %s146, 0
    %s149 = sadd.s32 %s148, 1
    %s150 = scalar_select %p147, %s148, %s149
    %p153 = pneg %p147
    %p154 = scmp.eq.s32.totalorder %s18, 1
    %p155 = por %p153, %p154
    %p156 = scmp.ne.s32.totalorder %s148, %s151
    %p157 = scmp.eq.s32.totalorder %s18, 0
    %p158 = por %p156, %p157
    %p159 = scmp.ne.s32.totalorder %s148, %s151
    %p160 = scmp.eq.s32.totalorder %s23, 1
    %p161 = por %p159, %p160
    %p162 = scmp.ne.s32.totalorder %s151, %s152
    %p163 = scmp.eq.s32.totalorder %s23, 0
    %p164 = por %p162, %p163
    %p165 = scmp.ne.s32.totalorder %s151, %s152
    %p166 = scmp.eq.s32.totalorder %s24, 1
    %p167 = por %p165, %p166
    %p169 = scmp.ne.s32.totalorder %s152, %s168
    %p170 = scmp.eq.s32.totalorder %s24, 0
    %p171 = por %p169, %p170
    %s172 = ssub.s32 %s18, %s25
    %p173 = scmp.eq.s32.totalorder %s172, 0
    %s175 = sadd.s32 %s174, 1
    %s176 = scalar_select %p173, %s174, %s175
    %p179 = pneg %p173
    %p180 = scmp.eq.s32.totalorder %s18, 1
    %p181 = por %p179, %p180
    %p182 = scmp.ne.s32.totalorder %s174, %s177
    %p183 = scmp.eq.s32.totalorder %s18, 0
    %p184 = por %p182, %p183
    %p185 = scmp.ne.s32.totalorder %s174, %s177
    %p186 = scmp.eq.s32.totalorder %s23, 1
    %p187 = por %p185, %p186
    %p188 = scmp.ne.s32.totalorder %s177, %s178
    %p189 = scmp.eq.s32.totalorder %s23, 0
    %p190 = por %p188, %p189
    %p191 = scmp.ne.s32.totalorder %s177, %s178
    %p192 = scmp.eq.s32.totalorder %s24, 1
    %p193 = por %p191, %p192
    %p195 = scmp.ne.s32.totalorder %s178, %s194
    %p196 = scmp.eq.s32.totalorder %s24, 0
    %p197 = por %p195, %p196
    %s198 = ssub.s32 %s18, %s25
    %p199 = scmp.eq.s32.totalorder %s198, 0
    %s201 = sadd.s32 %s200, 1
    %s202 = scalar_select %p199, %s200, %s201
    %p205 = pneg %p199
    %p206 = scmp.eq.s32.totalorder %s18, 1
    %p207 = por %p205, %p206
    %p208 = scmp.ne.s32.totalorder %s200, %s203
    %p209 = scmp.eq.s32.totalorder %s18, 0
    %p210 = por %p208, %p209
    %p211 = scmp.ne.s32.totalorder %s200, %s203
    %p212 = scmp.eq.s32.totalorder %s23, 1
    %p213 = por %p211, %p212
    %p214 = scmp.ne.s32.totalorder %s203, %s204
    %p215 = scmp.eq.s32.totalorder %s23, 0
    %p216 = por %p214, %p215
    %p217 = scmp.ne.s32.totalorder %s203, %s204
    %p218 = scmp.eq.s32.totalorder %s24, 1
    %p219 = por %p217, %p218
    %p221 = scmp.ne.s32.totalorder %s204, %s220
    %p222 = scmp.eq.s32.totalorder %s24, 0
    %p223 = por %p221, %p222
    %s224 = ssub.s32 %s18, %s25
    %p225 = scmp.eq.s32.totalorder %s224, 0
    %s227 = sadd.s32 %s226, 1
    %s228 = scalar_select %p225, %s226, %s227
    %p231 = pneg %p225
    %p232 = scmp.eq.s32.totalorder %s18, 1
    %p233 = por %p231, %p232
    %p234 = scmp.ne.s32.totalorder %s226, %s229
    %p235 = scmp.eq.s32.totalorder %s18, 0
    %p236 = por %p234, %p235
    %p237 = scmp.ne.s32.totalorder %s226, %s229
    %p238 = scmp.eq.s32.totalorder %s23, 1
    %p239 = por %p237, %p238
    %p240 = scmp.ne.s32.totalorder %s229, %s230
    %p241 = scmp.eq.s32.totalorder %s23, 0
    %p242 = por %p240, %p241
    %p243 = scmp.ne.s32.totalorder %s229, %s230
    %p244 = scmp.eq.s32.totalorder %s24, 1
    %p245 = por %p243, %p244
    %p247 = scmp.ne.s32.totalorder %s230, %s246
    %p248 = scmp.eq.s32.totalorder %s24, 0
    %p249 = por %p247, %p248
    %s250 = ssub.s32 %s18, %s25
    %p251 = scmp.eq.s32.totalorder %s250, 0
    %s253 = sadd.s32 %s252, 1
    %s254 = scalar_select %p251, %s252, %s253
    %p257 = pneg %p251
    %p258 = scmp.eq.s32.totalorder %s18, 1
    %p259 = por %p257, %p258
    %p260 = scmp.ne.s32.totalorder %s252, %s255
    %p261 = scmp.eq.s32.totalorder %s18, 0
    %p262 = por %p260, %p261
    %p263 = scmp.ne.s32.totalorder %s252, %s255
    %p264 = scmp.eq.s32.totalorder %s23, 1
    %p265 = por %p263, %p264
    %p266 = scmp.ne.s32.totalorder %s255, %s256
    %p267 = scmp.eq.s32.totalorder %s23, 0
    %p268 = por %p266, %p267
    %p269 = scmp.ne.s32.totalorder %s255, %s256
    %p270 = scmp.eq.s32.totalorder %s24, 1
    %p271 = por %p269, %p270
    %p273 = scmp.ne.s32.totalorder %s256, %s272
    %p274 = scmp.eq.s32.totalorder %s24, 0
    %p275 = por %p273, %p274
    %s276 = ssub.s32 %s18, %s25
    %p277 = scmp.eq.s32.totalorder %s276, 0
    %s279 = sadd.s32 %s278, 1
    %s280 = scalar_select %p277, %s278, %s279
    %p283 = pneg %p277
    %p284 = scmp.eq.s32.totalorder %s18, 1
    %p285 = por %p283, %p284
    %p286 = scmp.ne.s32.totalorder %s278, %s281
    %p287 = scmp.eq.s32.totalorder %s18, 0
    %p288 = por %p286, %p287
    %p289 = scmp.ne.s32.totalorder %s278, %s281
    %p290 = scmp.eq.s32.totalorder %s23, 1
    %p291 = por %p289, %p290
    %p292 = scmp.ne.s32.totalorder %s281, %s282
    %p293 = scmp.eq.s32.totalorder %s23, 0
    %p294 = por %p292, %p293
    %p295 = scmp.ne.s32.totalorder %s281, %s282
    %p296 = scmp.eq.s32.totalorder %s24, 1
    %p297 = por %p295, %p296
    %p299 = scmp.ne.s32.totalorder %s282, %s298
    %p300 = scmp.eq.s32.totalorder %s24, 0
    %p301 = por %p299, %p300
    %s302 = ssub.s32 %s18, %s25
    %p303 = scmp.eq.s32.totalorder %s302, 0
    %s305 = sadd.s32 %s304, 1
    %s306 = scalar_select %p303, %s304, %s305
    %p309 = pneg %p303
    %p310 = scmp.eq.s32.totalorder %s18, 1
    %p311 = por %p309, %p310
    %p312 = scmp.ne.s32.totalorder %s304, %s307
    %p313 = scmp.eq.s32.totalorder %s18, 0
    %p314 = por %p312, %p313
    %p315 = scmp.ne.s32.totalorder %s304, %s307
    %p316 = scmp.eq.s32.totalorder %s23, 1
    %p317 = por %p315, %p316
    %p318 = scmp.ne.s32.totalorder %s307, %s308
    %p319 = scmp.eq.s32.totalorder %s23, 0
    %p320 = por %p318, %p319
    %p321 = scmp.ne.s32.totalorder %s307, %s308
    %p322 = scmp.eq.s32.totalorder %s24, 1
    %p323 = por %p321, %p322
    %p325 = scmp.ne.s32.totalorder %s308, %s324
    %p326 = scmp.eq.s32.totalorder %s24, 0
    %p327 = por %p325, %p326
    %s329 = sadd.s32 %s328, 1
    %p332 = scmp.eq.s32.totalorder %s18, 1
    %p333 = scmp.ne.s32.totalorder %s328, %s330
    %p334 = scmp.eq.s32.totalorder %s18, 0
    %p335 = por %p333, %p334
    %p336 = scmp.ne.s32.totalorder %s328, %s330
    %p337 = scmp.eq.s32.totalorder %s23, 1
    %p338 = por %p336, %p337
    %p339 = scmp.ne.s32.totalorder %s330, %s331
    %p340 = scmp.eq.s32.totalorder %s23, 0
    %p341 = por %p339, %p340
    %p342 = scmp.ne.s32.totalorder %s330, %s331
    %p343 = scmp.eq.s32.totalorder %s24, 1
    %p344 = por %p342, %p343
    %p346 = scmp.ne.s32.totalorder %s331, %s345
    %p347 = scmp.eq.s32.totalorder %s24, 0
    %p348 = por %p346, %p347
    %p349 = scmp.le.s32.totalorder 1, %s18
    %p350 = scmp.lt.s32.totalorder %s18, 3
    %p351 = pnand %p349, %p350
    %p352 = pneg %p351
    // Predicated region
    $region9: #{stage_forward.1} parent=5 // pred_check
      _
    $region10: #{stage_forward.1} parent=5 // pred_check_branch
      %354 = sbr.rel (%p351) target = $region12
    $region11: #{stage_forward.1} parent=5 // pred_region
      %s355 = ssub.s32 %s18, 1
      // Predicated region
      $region13: #{stage_forward.1} parent=11 // pred_check
        %p356 = pneg %p39
      $region14: #{stage_forward.1} parent=11 // pred_check_branch
        %358 = sbr.rel (%p356) target = $region16
      $region15: #{stage_forward.1} parent=11 // pred_region
        _
      $region16: #{stage_forward.1} parent=11 // pred_fallthru
        _
      // Predicated region
      $region17: #{stage_forward.1} parent=11 // pred_check
        %p359 = pneg %p60
      $region18: #{stage_forward.1} parent=11 // pred_check_branch
        %361 = sbr.rel (%p359) target = $region20
      $region19: #{stage_forward.1} parent=11 // pred_region
        _
      $region20: #{stage_forward.1} parent=11 // pred_fallthru
        _
    $region12: #{stage_forward.1} parent=5 // pred_fallthru
      _
    %p362 = scmp.lt.s32.totalorder %s18, 2
    // Predicated region
    $region21: #{stage_forward.1} parent=5 // pred_check
      %p363 = pneg %p362
    $region22: #{stage_forward.1} parent=5 // pred_check_branch
      %365 = sbr.rel (%p363) target = $region24
    $region23: #{stage_forward.1} parent=5 // pred_region
      // Predicated region
      $region25: #{stage_forward.1} parent=23 // pred_check
        %p366 = pneg %p80
      $region26: #{stage_forward.1} parent=23 // pred_check_branch
        %368 = sbr.rel (%p366) target = $region28
      $region27: #{stage_forward.1} parent=23 // pred_region
        %p369 = scmp.lt.s32.totalorder %s18, 1
        %s370 = scalar_select %p369, %s18, 1
        %s371 = smul.addr %s370, 3
        %s372 = smul.addr %s371, 8
        %s373 = scalar_lea.vmem %s2, %s372
      $region28: #{stage_forward.1} parent=23 // pred_fallthru
        _
      // Predicated region
      $region29: #{stage_forward.1} parent=23 // pred_check
        %p374 = pneg %p106
      $region30: #{stage_forward.1} parent=23 // pred_check_branch
        %376 = sbr.rel (%p374) target = $region32
      $region31: #{stage_forward.1} parent=23 // pred_region
        %p377 = scmp.lt.s32.totalorder %s18, 1
        %s378 = scalar_select %p377, %s18, 1
        %s379 = smul.addr %s378, 3
        %s380 = smul.addr %s379, 8
        %s381 = scalar_lea.vmem %s3, %s380
      $region32: #{stage_forward.1} parent=23 // pred_fallthru
        _
      // Predicated region
      $region33: #{stage_forward.1} parent=23 // pred_check
        %p382 = pneg %p132
      $region34: #{stage_forward.1} parent=23 // pred_check_branch
        %384 = sbr.rel (%p382) target = $region36
      $region35: #{stage_forward.1} parent=23 // pred_region
        %p385 = scmp.lt.s32.totalorder %s18, 1
        %s386 = scalar_select %p385, %s18, 1
        %s387 = smul.addr %s386, 6
        %s388 = smul.addr %s387, 8
        %s389 = scalar_lea.vmem %s4, %s388
      $region36: #{stage_forward.1} parent=23 // pred_fallthru
        _
      // Predicated region
      $region37: #{stage_forward.1} parent=23 // pred_check
        %p390 = pneg %p158
      $region38: #{stage_forward.1} parent=23 // pred_check_branch
        %392 = sbr.rel (%p390) target = $region40
      $region39: #{stage_forward.1} parent=23 // pred_region
        %p393 = scmp.lt.s32.totalorder %s18, 1
        %s394 = scalar_select %p393, %s18, 1
        %s395 = smul.addr %s394, 6
        %s396 = smul.addr %s395, 8
        %s397 = scalar_lea.vmem %s5, %s396
      $region40: #{stage_forward.1} parent=23 // pred_fallthru
        _
      // Predicated region
      $region41: #{stage_forward.1} parent=23 // pred_check
        %p398 = pneg %p184
      $region42: #{stage_forward.1} parent=23 // pred_check_branch
        %400 = sbr.rel (%p398) target = $region44
      $region43: #{stage_forward.1} parent=23 // pred_region
        %p401 = scmp.lt.s32.totalorder %s18, 1
        %s402 = scalar_select %p401, %s18, 1
        %s403 = smul.addr %s402, 3
        %s404 = smul.addr %s403, 8
        %s405 = scalar_lea.vmem %s6, %s404
      $region44: #{stage_forward.1} parent=23 // pred_fallthru
        _
      // Predicated region
      $region45: #{stage_forward.1} parent=23 // pred_check
        %p406 = pneg %p210
      $region46: #{stage_forward.1} parent=23 // pred_check_branch
        %408 = sbr.rel (%p406) target = $region48
      $region47: #{stage_forward.1} parent=23 // pred_region
        %p409 = scmp.lt.s32.totalorder %s18, 1
        %s410 = scalar_select %p409, %s18, 1
        %s411 = smul.addr %s410, 3
        %s412 = smul.addr %s411, 8
        %s413 = scalar_lea.vmem %s7, %s412
      $region48: #{stage_forward.1} parent=23 // pred_fallthru
        _
      // Predicated region
      $region49: #{stage_forward.1} parent=23 // pred_check
        %p414 = pneg %p236
      $region50: #{stage_forward.1} parent=23 // pred_check_branch
        %416 = sbr.rel (%p414) target = $region52
      $region51: #{stage_forward.1} parent=23 // pred_region
        %p417 = scmp.lt.s32.totalorder %s18, 1
        %s418 = scalar_select %p417, %s18, 1
        %s419 = smul.addr %s418, 18
        %s420 = smul.addr %s419, 8
        %s421 = scalar_lea.vmem %s8, %s420
      $region52: #{stage_forward.1} parent=23 // pred_fallthru
        _
      // Predicated region
      $region53: #{stage_forward.1} parent=23 // pred_check
        %p422 = pneg %p262
      $region54: #{stage_forward.1} parent=23 // pred_check_branch
        %424 = sbr.rel (%p422) target = $region56
      $region55: #{stage_forward.1} parent=23 // pred_region
        %p425 = scmp.lt.s32.totalorder %s18, 1
        %s426 = scalar_select %p425, %s18, 1
        %s427 = smul.addr %s426, 6
        %s428 = smul.addr %s427, 8
        %s429 = scalar_lea.vmem %s9, %s428
      $region56: #{stage_forward.1} parent=23 // pred_fallthru
        _
      // Predicated region
      $region57: #{stage_forward.1} parent=23 // pred_check
        %p430 = pneg %p288
      $region58: #{stage_forward.1} parent=23 // pred_check_branch
        %432 = sbr.rel (%p430) target = $region60
      $region59: #{stage_forward.1} parent=23 // pred_region
        %p433 = scmp.lt.s32.totalorder %s18, 1
        %s434 = scalar_select %p433, %s18, 1
        %s435 = smul.addr %s434, 18
        %s436 = smul.addr %s435, 8
        %s437 = scalar_lea.vmem %s10, %s436
      $region60: #{stage_forward.1} parent=23 // pred_fallthru
        _
      // Predicated region
      $region61: #{stage_forward.1} parent=23 // pred_check
        %p438 = pneg %p314
      $region62: #{stage_forward.1} parent=23 // pred_check_branch
        %440 = sbr.rel (%p438) target = $region64
      $region63: #{stage_forward.1} parent=23 // pred_region
        %p441 = scmp.lt.s32.totalorder %s18, 1
        %s442 = scalar_select %p441, %s18, 1
        %s443 = smul.addr %s442, 3
        %s444 = smul.addr %s443, 8
        %s445 = scalar_lea.vmem %s11, %s444
      $region64: #{stage_forward.1} parent=23 // pred_fallthru
        _
    $region24: #{stage_forward.1} parent=5 // pred_fallthru
      _
    %p446 = scmp.le.s32.totalorder 1, %s18
    %p447 = scmp.lt.s32.totalorder %s18, 3
    %p448 = pnand %p446, %p447
    %p449 = pneg %p448
    // Predicated region
    $region65: #{stage_forward.1} parent=5 // pred_check
      _
    $region66: #{stage_forward.1} parent=5 // pred_check_branch
      %451 = sbr.rel (%p448) target = $region68
    $region67: #{stage_forward.1} parent=5 // pred_region
      %s452 = ssub.s32 %s18, 1
      %p453 = pneg %p39
      %p454 = pneg %p36
      %p455 = pneg %p60
      %p456 = pneg %p57
      %p457 = scmp.lt.s32.totalorder %s23, 1
      %s458 = scalar_select %p457, %s23, 1
      %s459 = smul.addr %s458, 3
      %s460 = smul.addr %s459, 8
      %s461 = scalar_lea.vmem %s2, %s460
      %p462 = pneg %p86
      %p463 = pneg %p83
      %p464 = scmp.lt.s32.totalorder %s23, 1
      %s465 = scalar_select %p464, %s23, 1
      %s466 = smul.addr %s465, 3
      %s467 = smul.addr %s466, 8
      %s468 = scalar_lea.vmem %s3, %s467
      %p469 = pneg %p112
      %p470 = pneg %p109
      %p471 = scmp.lt.s32.totalorder %s23, 1
      %s472 = scalar_select %p471, %s23, 1
      %s473 = smul.addr %s472, 6
      %s474 = smul.addr %s473, 8
      %s475 = scalar_lea.vmem %s4, %s474
      %p476 = pneg %p138
      %p477 = pneg %p135
      %p478 = scmp.lt.s32.totalorder %s23, 1
      %s479 = scalar_select %p478, %s23, 1
      %s480 = smul.addr %s479, 6
      %s481 = smul.addr %s480, 8
      %s482 = scalar_lea.vmem %s5, %s481
      %p483 = pneg %p164
      %p484 = pneg %p161
      %p485 = scmp.lt.s32.totalorder %s23, 1
      %s486 = scalar_select %p485, %s23, 1
      %s487 = smul.addr %s486, 3
      %s488 = smul.addr %s487, 8
      %s489 = scalar_lea.vmem %s6, %s488
      %p490 = pneg %p190
      %p491 = pneg %p187
      %p492 = scmp.lt.s32.totalorder %s23, 1
      %s493 = scalar_select %p492, %s23, 1
      %s494 = smul.addr %s493, 3
      %s495 = smul.addr %s494, 8
      %s496 = scalar_lea.vmem %s7, %s495
      %p497 = pneg %p216
      %p498 = pneg %p213
      %p499 = scmp.lt.s32.totalorder %s23, 1
      %s500 = scalar_select %p499, %s23, 1
      %s501 = smul.addr %s500, 18
      %s502 = smul.addr %s501, 8
      %s503 = scalar_lea.vmem %s8, %s502
      %p504 = pneg %p242
      %p505 = pneg %p239
      %p506 = scmp.lt.s32.totalorder %s23, 1
      %s507 = scalar_select %p506, %s23, 1
      %s508 = smul.addr %s507, 6
      %s509 = smul.addr %s508, 8
      %s510 = scalar_lea.vmem %s9, %s509
      %p511 = pneg %p268
      %p512 = pneg %p265
      %p513 = scmp.lt.s32.totalorder %s23, 1
      %s514 = scalar_select %p513, %s23, 1
      %s515 = smul.addr %s514, 18
      %s516 = smul.addr %s515, 8
      %s517 = scalar_lea.vmem %s10, %s516
      %p518 = pneg %p294
      %p519 = pneg %p291
      %p520 = scmp.lt.s32.totalorder %s23, 1
      %s521 = scalar_select %p520, %s23, 1
      %s522 = smul.addr %s521, 3
      %s523 = smul.addr %s522, 8
      %s524 = scalar_lea.vmem %s11, %s523
      %p525 = pneg %p320
      %p526 = pneg %p317
      %p527 = pneg %p341
      %p528 = pneg %p338
      %p529 = scmp.lt.s32.totalorder %s23, 1
      %s530 = scalar_select %p529, %s23, 1
      %s531 = smul.addr %s530, 3
      %s532 = smul.addr %s531, 8
      %s533 = scalar_lea.vmem %s2, %s532
      %p534 = scmp.lt.s32.totalorder %s23, 1
      %s535 = scalar_select %p534, %s23, 1
      %s536 = smul.addr %s535, 3
      %s537 = smul.addr %s536, 8
      %s538 = scalar_lea.vmem %s3, %s537
      %p539 = scmp.lt.s32.totalorder %s23, 1
      %s540 = scalar_select %p539, %s23, 1
      %s541 = smul.addr %s540, 6
      %s542 = smul.addr %s541, 8
      %s543 = scalar_lea.vmem %s4, %s542
      %p544 = scmp.lt.s32.totalorder %s23, 1
      %s545 = scalar_select %p544, %s23, 1
      %s546 = smul.addr %s545, 6
      %s547 = smul.addr %s546, 8
      %s548 = scalar_lea.vmem %s5, %s547
      %p549 = scmp.lt.s32.totalorder %s23, 1
      %s550 = scalar_select %p549, %s23, 1
      %s551 = smul.addr %s550, 3
      %s552 = smul.addr %s551, 8
      %s553 = scalar_lea.vmem %s6, %s552
      %p554 = scmp.lt.s32.totalorder %s23, 1
      %s555 = scalar_select %p554, %s23, 1
      %s556 = smul.addr %s555, 3
      %s557 = smul.addr %s556, 8
      %s558 = scalar_lea.vmem %s7, %s557
      %p559 = scmp.lt.s32.totalorder %s23, 1
      %s560 = scalar_select %p559, %s23, 1
      %s561 = smul.addr %s560, 18
      %s562 = smul.addr %s561, 8
      %s563 = scalar_lea.vmem %s8, %s562
      %p564 = scmp.lt.s32.totalorder %s23, 1
      %s565 = scalar_select %p564, %s23, 1
      %s566 = smul.addr %s565, 6
      %s567 = smul.addr %s566, 8
      %s568 = scalar_lea.vmem %s9, %s567
      %p569 = scmp.lt.s32.totalorder %s23, 1
      %s570 = scalar_select %p569, %s23, 1
      %s571 = smul.addr %s570, 18
      %s572 = smul.addr %s571, 8
      %s573 = scalar_lea.vmem %s10, %s572
      %p574 = scmp.lt.s32.totalorder %s23, 1
      %s575 = scalar_select %p574, %s23, 1
      %s576 = smul.addr %s575, 3
      %s577 = smul.addr %s576, 8
      %s578 = scalar_lea.vmem %s11, %s577
      %p579 = scmp.eq.s32.totalorder %s23, 0
      // Predicated region
      $region69: #{stage_forward.1} parent=67 // pred_check
        %p580 = pneg %p579
      $region70: #{stage_forward.1} parent=67 // pred_check_branch
        %582 = sbr.rel (%p580) target = $region72
      $region71: #{stage_forward.1} parent=67 // pred_region
        %v583 = vld [vmem:[%s0] sm:$0xff]
        %v584 = vld [vmem:[%s0 + $0x8] sm:$0xff]
        %v585 = vld [vmem:[%s0 + $0x10] sm:$0xff]
        %586 = vst [vmem:[%s12] sm:$0xff] %v583
        %587 = vst [vmem:[%s12 + $0x8] sm:$0xff] %v584
        %588 = vst [vmem:[%s12 + $0x10] sm:$0xff] %v585
      $region72: #{stage_forward.1} parent=67 // pred_fallthru
        _
      %v589 = vld [vmem:[%s12] sm:$0xff]
      %v590 = vld [vmem:[%s12 + $0x8] sm:$0xff]
      %v591 = vld [vmem:[%s12 + $0x10] sm:$0xff]
      %v592 = vld [vmem:[%s1] sm:$0x1]
      %v594 = vlaneseq
      %v595 = vshrl.u32 %v594, 7
      %v596 = vsub.s32 0, %v595
      %v597 = vrot.slane %v592, %v596
      %v599 = vmul.f32 %v589, %v597
      %v600 = vmul.f32 %v590, %v597
      %v601 = vmul.f32 %v591, %v597
      %v602 = vld [vmem:[%s533] sm:$0xff]
      %v603 = vld [vmem:[%s533 + $0x8] sm:$0xff]
      %v604 = vld [vmem:[%s533 + $0x10] sm:$0xff]
      %606 = vset.pattern.permute.xlu0 2
      %607 = vperm.xlu0 %606, %v602
      %v608 = vpop.permute.xlu0 %607
      %611 = vset.pattern.permute.xlu0 2
      %612 = vperm.xlu0 %611, %v603
      %v613 = vpop.permute.xlu0 %612
      %616 = vset.pattern.permute.xlu0 2
      %617 = vperm.xlu0 %616, %v604
      %v618 = vpop.permute.xlu0 %617
      %v620 = vmul.f32 %v608, %v599
      %v621 = vmul.f32 %v613, %v600
      %v622 = vmul.f32 %v618, %v601
      %623 = vrot.lane.b32.xlu0 %v599, 2
      %v624 = vpop.permute.xlu0 %623
      %625 = vrot.lane.b32.xlu0 %v600, 2
      %v626 = vpop.permute.xlu0 %625
      %627 = vrot.lane.b32.xlu0 %v601, 2
      %v628 = vpop.permute.xlu0 %627
      %629 = vset.pattern.permute.xlu0 0
      %630 = vperm.xlu0 %629, %v602
      %v631 = vpop.permute.xlu0 %630
      %633 = vset.pattern.permute.xlu0 0
      %634 = vperm.xlu0 %633, %v603
      %v635 = vpop.permute.xlu0 %634
      %637 = vset.pattern.permute.xlu0 0
      %638 = vperm.xlu0 %637, %v604
      %v639 = vpop.permute.xlu0 %638
      %v641 = vmul.f32 %v631, %v624
      %v642 = vmul.f32 %v635, %v626
      %v643 = vmul.f32 %v639, %v628
      %v644 = vadd.f32 %v620, %v641
      %v645 = vadd.f32 %v621, %v642
      %v646 = vadd.f32 %v622, %v643
      %647 = vrot.lane.b32.xlu0 %v599, 1
      %v648 = vpop.permute.xlu0 %647
      %649 = vrot.lane.b32.xlu0 %v600, 1
      %v650 = vpop.permute.xlu0 %649
      %651 = vrot.lane.b32.xlu0 %v601, 1
      %v652 = vpop.permute.xlu0 %651
      %653 = vset.pattern.permute.xlu0 1
      %654 = vperm.xlu0 %653, %v602
      %v655 = vpop.permute.xlu0 %654
      %657 = vset.pattern.permute.xlu0 1
      %658 = vperm.xlu0 %657, %v603
      %v659 = vpop.permute.xlu0 %658
      %661 = vset.pattern.permute.xlu0 1
      %662 = vperm.xlu0 %661, %v604
      %v663 = vpop.permute.xlu0 %662
      %v665 = vmul.f32 %v655, %v648
      %v666 = vmul.f32 %v659, %v650
      %v667 = vmul.f32 %v663, %v652
      %v668 = vadd.f32 %v644, %v665
      %v669 = vadd.f32 %v645, %v666
      %v670 = vadd.f32 %v646, %v667
      %671 = vrot.lane.b32.xlu0 %v599, 127
      %v672 = vpop.permute.xlu0 %671
      %673 = vrot.lane.b32.xlu0 %v600, 127
      %v674 = vpop.permute.xlu0 %673
      %675 = vrot.lane.b32.xlu0 %v601, 127
      %v676 = vpop.permute.xlu0 %675
      %677 = vset.pattern.permute.xlu0 3
      %678 = vperm.xlu0 %677, %v602
      %v679 = vpop.permute.xlu0 %678
      %681 = vset.pattern.permute.xlu0 3
      %682 = vperm.xlu0 %681, %v603
      %v683 = vpop.permute.xlu0 %682
      %685 = vset.pattern.permute.xlu0 3
      %686 = vperm.xlu0 %685, %v604
      %v687 = vpop.permute.xlu0 %686
      %v689 = vmul.f32 %v679, %v672
      %v690 = vmul.f32 %v683, %v674
      %v691 = vmul.f32 %v687, %v676
      %v692 = vadd.f32 %v668, %v689
      %v693 = vadd.f32 %v669, %v690
      %v694 = vadd.f32 %v670, %v691
      %695 = vrot.lane.b32.xlu0 %v599, 126
      %v696 = vpop.permute.xlu0 %695
      %697 = vrot.lane.b32.xlu0 %v600, 126
      %v698 = vpop.permute.xlu0 %697
      %699 = vrot.lane.b32.xlu0 %v601, 126
      %v700 = vpop.permute.xlu0 %699
      %701 = vset.pattern.permute.xlu0 4
      %702 = vperm.xlu0 %701, %v602
      %v703 = vpop.permute.xlu0 %702
      %705 = vset.pattern.permute.xlu0 4
      %706 = vperm.xlu0 %705, %v603
      %v707 = vpop.permute.xlu0 %706
      %709 = vset.pattern.permute.xlu0 4
      %710 = vperm.xlu0 %709, %v604
      %v711 = vpop.permute.xlu0 %710
      %v713 = vmul.f32 %v703, %v696
      %v714 = vmul.f32 %v707, %v698
      %v715 = vmul.f32 %v711, %v700
      %v716 = vadd.f32 %v692, %v713
      %v717 = vadd.f32 %v693, %v714
      %v718 = vadd.f32 %v694, %v715
      %v719 = vld [vmem:[%s538] sm:$0xff]
      %v720 = vld [vmem:[%s538 + $0x8] sm:$0xff]
      %v721 = vld [vmem:[%s538 + $0x10] sm:$0xff]
      %723 = vset.pattern.permute.xlu0 0
      %724 = vperm.xlu0 %723, %v719
      %v725 = vpop.permute.xlu0 %724
      %728 = vset.pattern.permute.xlu0 0
      %729 = vperm.xlu0 %728, %v720
      %v730 = vpop.permute.xlu0 %729
      %733 = vset.pattern.permute.xlu0 0
      %734 = vperm.xlu0 %733, %v721
      %v735 = vpop.permute.xlu0 %734
      %v737 = vadd.f32 %v716, %v725
      %v738 = vadd.f32 %v717, %v730
      %v739 = vadd.f32 %v718, %v735
      %v740 = vld [vmem:[%s543] sm:$0xff]
      %v741 = vld [vmem:[%s543 + $0x8] sm:$0xff]
      %v742 = vld [vmem:[%s543 + $0x10] sm:$0xff]
      %v743 = vld [vmem:[%s543 + $0x18] sm:$0xff]
      %v744 = vld [vmem:[%s543 + $0x20] sm:$0xff]
      %v745 = vld [vmem:[%s543 + $0x28] sm:$0xff]
      %v746 = vld [vmem:[%s548] sm:$0xff]
      %v747 = vld [vmem:[%s548 + $0x8] sm:$0xff]
      %v748 = vld [vmem:[%s548 + $0x10] sm:$0xff]
      %v749 = vld [vmem:[%s548 + $0x18] sm:$0xff]
      %v750 = vld [vmem:[%s548 + $0x20] sm:$0xff]
      %v751 = vld [vmem:[%s548 + $0x28] sm:$0xff]
      %753 = vset.pattern.permute.xlu0 0
      %754 = vperm.xlu0 %753, %v746
      %v755 = vpop.permute.xlu0 %754
      %758 = vset.pattern.permute.xlu0 0
      %759 = vperm.xlu0 %758, %v747
      %v760 = vpop.permute.xlu0 %759
      %763 = vset.pattern.permute.xlu0 0
      %764 = vperm.xlu0 %763, %v748
      %v765 = vpop.permute.xlu0 %764
      %768 = vset.pattern.permute.xlu0 0
      %769 = vperm.xlu0 %768, %v749
      %v770 = vpop.permute.xlu0 %769
      %773 = vset.pattern.permute.xlu0 0
      %774 = vperm.xlu0 %773, %v750
      %v775 = vpop.permute.xlu0 %774
      %778 = vset.pattern.permute.xlu0 0
      %779 = vperm.xlu0 %778, %v751
      %v780 = vpop.permute.xlu0 %779
      %vm782 = vcmask 64512
      %v784 = vsel %vm782, %v740, 0
      %v787 = vsel %vm782, %v741, 0
      %789 = vmatprep.subr.mxu0 0.0
      %790 = vmatpush1.msra.mxu0 %v737
      %791 = vmatprep.subr.mxu0 0.0
      %792 = vmatpush1.msra.mxu0 0.0
      %793 = vmatprep.subr.mxu0 0.0
      %794 = vmatpush1.msra.mxu0 0.0
      %795 = vmatprep.subr.mxu0 0.0
      %796 = vmatpush1.msra.mxu0 0.0
      %797 = vmatprep.subr.mxu0 0.0
      %798 = vmatpush1.msra.mxu0 0.0
      %799 = vmatprep.subr.mxu0 0.0
      %800 = vmatpush1.msra.mxu0 0.0
      %801 = vmatprep.subr.mxu0 0.0
      %802 = vmatpush1.msra.mxu0 0.0
      %803 = vmatprep.subr.mxu0 0.0
      %804 = vmatpush1.msra.mxu0 0.0
      %805 = vmatprep.subr.mxu0 0.0
      %806 = vmatpush1.msra.mxu0 0.0
      %807 = vmatprep.subr.mxu0 0.0
      %808 = vmatpush1.msra.mxu0 0.0
      %809 = vmatprep.subr.mxu0 0.0
      %810 = vmatpush1.msra.mxu0 0.0
      %811 = vmatprep.subr.mxu0 0.0
      %812 = vmatpush1.msra.mxu0 0.0
      %813 = vmatprep.subr.mxu0 0.0
      %814 = vmatpush1.msra.mxu0 0.0
      %815 = vmatprep.subr.mxu0 0.0
      %816 = vmatpush1.msra.mxu0 0.0
      %817 = vmatprep.subr.mxu0 0.0
      %818 = vmatpush1.msra.mxu0 0.0
      %819 = vmatprep.subr.mxu0 0.0
      %820 = vmatpush1.msra.mxu0 0.0
      %821 = vmatprep.subr.mxu0 0.0
      %822 = vmatpush1.msra.mxu0 0.0
      %823 = vmatprep.subr.mxu0 0.0
      %824 = vmatpush1.msra.mxu0 0.0
      %825 = vmatprep.subr.mxu0 0.0
      %826 = vmatpush1.msra.mxu0 0.0
      %827 = vmatprep.subr.mxu0 0.0
      %828 = vmatpush1.msra.mxu0 0.0
      %829 = vmatprep.subr.mxu0 0.0
      %830 = vmatpush1.msra.mxu0 0.0
      %831 = vmatprep.subr.mxu0 0.0
      %832 = vmatpush1.msra.mxu0 0.0
      %833 = vmatprep.subr.mxu0 0.0
      %834 = vmatpush1.msra.mxu0 0.0
      %835 = vmatprep.subr.mxu0 0.0
      %836 = vmatpush1.msra.mxu0 0.0
      %837 = vmatprep.subr.mxu0 0.0
      %838 = vmatpush1.msra.mxu0 0.0
      %839 = vmatprep.subr.mxu0 0.0
      %840 = vmatpush1.msra.mxu0 0.0
      %841 = vmatprep.subr.mxu0 0.0
      %842 = vmatpush1.msra.mxu0 0.0
      %843 = vmatprep.subr.mxu0 0.0
      %844 = vmatpush1.msra.mxu0 0.0
      %845 = vmatprep.subr.mxu0 0.0
      %846 = vmatpush1.msra.mxu0 0.0
      %847 = vmatprep.subr.mxu0 0.0
      %848 = vmatpush1.msra.mxu0 0.0
      %849 = vmatprep.subr.mxu0 0.0
      %850 = vmatpush1.msra.mxu0 0.0
      %851 = vmatprep.subr.mxu0 0.0
      %852 = vmatpush1.msra.mxu0 0.0
      %853 = vmatprep.mubr.f32.mxu0 0.0
      %854 = vmatmul.mubr.f32.gmra.mrb[0].mxu0 %v784
      %v855 = vpop.f32.mrb[0].mxu0
      %v856 = vadd.f32 %v755, %v855
      %v857 = vpop.f32.mrb[0].mxu0
      %858 = vmatprep.mubr.f32.mxu0 0.0
      %859 = vmatmul.mubr.f32.gmra.mrb[0].mxu0 %v787
      %v860 = vpop.f32.mrb[0].mxu0
      %v861 = vadd.f32 %v760, %v860
      %v862 = vpop.f32.mrb[0].mxu0
      %863 = vdwg.mxu0
      %v865 = vsel %vm782, %v742, 0
      %v868 = vsel %vm782, %v743, 0
      %870 = vmatprep.subr.mxu0 0.0
      %871 = vmatpush1.msra.mxu0 %v738
      %872 = vmatprep.subr.mxu0 0.0
      %873 = vmatpush1.msra.mxu0 0.0
      %874 = vmatprep.subr.mxu0 0.0
      %875 = vmatpush1.msra.mxu0 0.0
      %876 = vmatprep.subr.mxu0 0.0
      %877 = vmatpush1.msra.mxu0 0.0
      %878 = vmatprep.subr.mxu0 0.0
      %879 = vmatpush1.msra.mxu0 0.0
      %880 = vmatprep.subr.mxu0 0.0
      %881 = vmatpush1.msra.mxu0 0.0
      %882 = vmatprep.subr.mxu0 0.0
      %883 = vmatpush1.msra.mxu0 0.0
      %884 = vmatprep.subr.mxu0 0.0
      %885 = vmatpush1.msra.mxu0 0.0
      %886 = vmatprep.subr.mxu0 0.0
      %887 = vmatpush1.msra.mxu0 0.0
      %888 = vmatprep.subr.mxu0 0.0
      %889 = vmatpush1.msra.mxu0 0.0
      %890 = vmatprep.subr.mxu0 0.0
      %891 = vmatpush1.msra.mxu0 0.0
      %892 = vmatprep.subr.mxu0 0.0
      %893 = vmatpush1.msra.mxu0 0.0
      %894 = vmatprep.subr.mxu0 0.0
      %895 = vmatpush1.msra.mxu0 0.0
      %896 = vmatprep.subr.mxu0 0.0
      %897 = vmatpush1.msra.mxu0 0.0
      %898 = vmatprep.subr.mxu0 0.0
      %899 = vmatpush1.msra.mxu0 0.0
      %900 = vmatprep.subr.mxu0 0.0
      %901 = vmatpush1.msra.mxu0 0.0
      %902 = vmatprep.subr.mxu0 0.0
      %903 = vmatpush1.msra.mxu0 0.0
      %904 = vmatprep.subr.mxu0 0.0
      %905 = vmatpush1.msra.mxu0 0.0
      %906 = vmatprep.subr.mxu0 0.0
      %907 = vmatpush1.msra.mxu0 0.0
      %908 = vmatprep.subr.mxu0 0.0
      %909 = vmatpush1.msra.mxu0 0.0
      %910 = vmatprep.subr.mxu0 0.0
      %911 = vmatpush1.msra.mxu0 0.0
      %912 = vmatprep.subr.mxu0 0.0
      %913 = vmatpush1.msra.mxu0 0.0
      %914 = vmatprep.subr.mxu0 0.0
      %915 = vmatpush1.msra.mxu0 0.0
      %916 = vmatprep.subr.mxu0 0.0
      %917 = vmatpush1.msra.mxu0 0.0
      %918 = vmatprep.subr.mxu0 0.0
      %919 = vmatpush1.msra.mxu0 0.0
      %920 = vmatprep.subr.mxu0 0.0
      %921 = vmatpush1.msra.mxu0 0.0
      %922 = vmatprep.subr.mxu0 0.0
      %923 = vmatpush1.msra.mxu0 0.0
      %924 = vmatprep.subr.mxu0 0.0
      %925 = vmatpush1.msra.mxu0 0.0
      %926 = vmatprep.subr.mxu0 0.0
      %927 = vmatpush1.msra.mxu0 0.0
      %928 = vmatprep.subr.mxu0 0.0
      %929 = vmatpush1.msra.mxu0 0.0
      %930 = vmatprep.subr.mxu0 0.0
      %931 = vmatpush1.msra.mxu0 0.0
      %932 = vmatprep.subr.mxu0 0.0
      %933 = vmatpush1.msra.mxu0 0.0
      %934 = vmatprep.mubr.f32.mxu0 0.0
      %935 = vmatmul.mubr.f32.gmra.mrb[0].mxu0 %v865
      %v936 = vpop.f32.mrb[0].mxu0
      %v937 = vadd.f32 %v765, %v936
      %v938 = vpop.f32.mrb[0].mxu0
      %939 = vmatprep.mubr.f32.mxu0 0.0
      %940 = vmatmul.mubr.f32.gmra.mrb[0].mxu0 %v868
      %v941 = vpop.f32.mrb[0].mxu0
      %v942 = vadd.f32 %v770, %v941
      %v943 = vpop.f32.mrb[0].mxu0
      %944 = vdwg.mxu0
      %v946 = vsel %vm782, %v744, 0
      %v949 = vsel %vm782, %v745, 0
      %951 = vmatprep.subr.mxu0 0.0
      %952 = vmatpush1.msra.mxu0 %v739
      %953 = vmatprep.subr.mxu0 0.0
      %954 = vmatpush1.msra.mxu0 0.0
      %955 = vmatprep.subr.mxu0 0.0
      %956 = vmatpush1.msra.mxu0 0.0
      %957 = vmatprep.subr.mxu0 0.0
      %958 = vmatpush1.msra.mxu0 0.0
      %959 = vmatprep.subr.mxu0 0.0
      %960 = vmatpush1.msra.mxu0 0.0
      %961 = vmatprep.subr.mxu0 0.0
      %962 = vmatpush1.msra.mxu0 0.0
      %963 = vmatprep.subr.mxu0 0.0
      %964 = vmatpush1.msra.mxu0 0.0
      %965 = vmatprep.subr.mxu0 0.0
      %966 = vmatpush1.msra.mxu0 0.0
      %967 = vmatprep.subr.mxu0 0.0
      %968 = vmatpush1.msra.mxu0 0.0
      %969 = vmatprep.subr.mxu0 0.0
      %970 = vmatpush1.msra.mxu0 0.0
      %971 = vmatprep.subr.mxu0 0.0
      %972 = vmatpush1.msra.mxu0 0.0
      %973 = vmatprep.subr.mxu0 0.0
      %974 = vmatpush1.msra.mxu0 0.0
      %975 = vmatprep.subr.mxu0 0.0
      %976 = vmatpush1.msra.mxu0 0.0
      %977 = vmatprep.subr.mxu0 0.0
      %978 = vmatpush1.msra.mxu0 0.0
      %979 = vmatprep.subr.mxu0 0.0
      %980 = vmatpush1.msra.mxu0 0.0
      %981 = vmatprep.subr.mxu0 0.0
      %982 = vmatpush1.msra.mxu0 0.0
      %983 = vmatprep.subr.mxu0 0.0
      %984 = vmatpush1.msra.mxu0 0.0
      %985 = vmatprep.subr.mxu0 0.0
      %986 = vmatpush1.msra.mxu0 0.0
      %987 = vmatprep.subr.mxu0 0.0
      %988 = vmatpush1.msra.mxu0 0.0
      %989 = vmatprep.subr.mxu0 0.0
      %990 = vmatpush1.msra.mxu0 0.0
      %991 = vmatprep.subr.mxu0 0.0
      %992 = vmatpush1.msra.mxu0 0.0
      %993 = vmatprep.subr.mxu0 0.0
      %994 = vmatpush1.msra.mxu0 0.0
      %995 = vmatprep.subr.mxu0 0.0
      %996 = vmatpush1.msra.mxu0 0.0
      %997 = vmatprep.subr.mxu0 0.0
      %998 = vmatpush1.msra.mxu0 0.0
      %999 = vmatprep.subr.mxu0 0.0
      %1000 = vmatpush1.msra.mxu0 0.0
      %1001 = vmatprep.subr.mxu0 0.0
      %1002 = vmatpush1.msra.mxu0 0.0
      %1003 = vmatprep.subr.mxu0 0.0
      %1004 = vmatpush1.msra.mxu0 0.0
      %1005 = vmatprep.subr.mxu0 0.0
      %1006 = vmatpush1.msra.mxu0 0.0
      %1007 = vmatprep.subr.mxu0 0.0
      %1008 = vmatpush1.msra.mxu0 0.0
      %1009 = vmatprep.subr.mxu0 0.0
      %1010 = vmatpush1.msra.mxu0 0.0
      %1011 = vmatprep.subr.mxu0 0.0
      %1012 = vmatpush1.msra.mxu0 0.0
      %1013 = vmatprep.subr.mxu0 0.0
      %1014 = vmatpush1.msra.mxu0 0.0
      %1015 = vmatprep.mubr.f32.mxu0 0.0
      %1016 = vmatmul.mubr.f32.gmra.mrb[0].mxu0 %v946
      %v1017 = vpop.f32.mrb[0].mxu0
      %v1018 = vadd.f32 %v775, %v1017
      %v1019 = vpop.f32.mrb[0].mxu0
      %1020 = vmatprep.mubr.f32.mxu0 0.0
      %1021 = vmatmul.mubr.f32.gmra.mrb[0].mxu0 %v949
      %v1022 = vpop.f32.mrb[0].mxu0
      %v1023 = vadd.f32 %v780, %v1022
      %v1024 = vpop.f32.mrb[0].mxu0
      %1025 = vdwg.mxu0
      %v1026 = vmul.f32 %v856, 0.5
      %v1027 = vmul.f32 %v861, 0.5
      %v1028 = vmul.f32 %v937, 0.5
      %v1029 = vmul.f32 %v942, 0.5
      %v1030 = vmul.f32 %v1018, 0.5
      %v1031 = vmul.f32 %v1023, 0.5
      %v1032 = vmul.f32 %v856, 0.70710677
      %v1033 = vmul.f32 %v861, 0.70710677
      %v1034 = vmul.f32 %v937, 0.70710677
      %v1035 = vmul.f32 %v942, 0.70710677
      %v1036 = vmul.f32 %v1018, 0.70710677
      %v1037 = vmul.f32 %v1023, 0.70710677
      %v1038 = verf.f32.pop %v1032
      %v1039 = verf.f32.pop %v1033
      %v1040 = verf.f32.pop %v1034
      %v1041 = verf.f32.pop %v1035
      %v1042 = verf.f32.pop %v1036
      %v1043 = verf.f32.pop %v1037
      %v1044 = vadd.f32 %v1038, 1.0
      %v1045 = vadd.f32 %v1039, 1.0
      %v1046 = vadd.f32 %v1040, 1.0
      %v1047 = vadd.f32 %v1041, 1.0
      %v1048 = vadd.f32 %v1042, 1.0
      %v1049 = vadd.f32 %v1043, 1.0
      %v1050 = vmul.f32 %v1026, %v1044
      %v1051 = vmul.f32 %v1027, %v1045
      %v1052 = vmul.f32 %v1028, %v1046
      %v1053 = vmul.f32 %v1029, %v1047
      %v1054 = vmul.f32 %v1030, %v1048
      %v1055 = vmul.f32 %v1031, %v1049
      %v1056 = vld [vmem:[%s553] sm:$0xff]
      %v1057 = vld [vmem:[%s553 + $0x8] sm:$0xff]
      %v1058 = vld [vmem:[%s553 + $0x10] sm:$0xff]
      %v1059 = vld [vmem:[%s558] sm:$0xff]
      %v1060 = vld [vmem:[%s558 + $0x8] sm:$0xff]
      %v1061 = vld [vmem:[%s558 + $0x10] sm:$0xff]
      %1063 = vset.pattern.permute.xlu0 0
      %1064 = vperm.xlu0 %1063, %v1059
      %v1065 = vpop.permute.xlu0 %1064
      %1068 = vset.pattern.permute.xlu0 0
      %1069 = vperm.xlu0 %1068, %v1060
      %v1070 = vpop.permute.xlu0 %1069
      %1073 = vset.pattern.permute.xlu0 0
      %1074 = vperm.xlu0 %1073, %v1061
      %v1075 = vpop.permute.xlu0 %1074
      %vm1077 = vcmask 130048
      %v1079 = vsel %vm1077, %v1056, 0
      %1081 = vmatprep.subr.mxu0 0.0
      %1082 = vmatpush1.msra.mxu0 %v1050
      %1083 = vmatprep.subr.mxu0 0.0
      %1084 = vmatpush1.msra.mxu0 %v1051
      %1085 = vmatprep.subr.mxu0 0.0
      %1086 = vmatpush1.msra.mxu0 0.0
      %1087 = vmatprep.subr.mxu0 0.0
      %1088 = vmatpush1.msra.mxu0 0.0
      %1089 = vmatprep.subr.mxu0 0.0
      %1090 = vmatpush1.msra.mxu0 0.0
      %1091 = vmatprep.subr.mxu0 0.0
      %1092 = vmatpush1.msra.mxu0 0.0
      %1093 = vmatprep.subr.mxu0 0.0
      %1094 = vmatpush1.msra.mxu0 0.0
      %1095 = vmatprep.subr.mxu0 0.0
      %1096 = vmatpush1.msra.mxu0 0.0
      %1097 = vmatprep.subr.mxu0 0.0
      %1098 = vmatpush1.msra.mxu0 0.0
      %1099 = vmatprep.subr.mxu0 0.0
      %1100 = vmatpush1.msra.mxu0 0.0
      %1101 = vmatprep.subr.mxu0 0.0
      %1102 = vmatpush1.msra.mxu0 0.0
      %1103 = vmatprep.subr.mxu0 0.0
      %1104 = vmatpush1.msra.mxu0 0.0
      %1105 = vmatprep.subr.mxu0 0.0
      %1106 = vmatpush1.msra.mxu0 0.0
      %1107 = vmatprep.subr.mxu0 0.0
      %1108 = vmatpush1.msra.mxu0 0.0
      %1109 = vmatprep.subr.mxu0 0.0
      %1110 = vmatpush1.msra.mxu0 0.0
      %1111 = vmatprep.subr.mxu0 0.0
      %1112 = vmatpush1.msra.mxu0 0.0
      %1113 = vmatprep.subr.mxu0 0.0
      %1114 = vmatpush1.msra.mxu0 0.0
      %1115 = vmatprep.subr.mxu0 0.0
      %1116 = vmatpush1.msra.mxu0 0.0
      %1117 = vmatprep.subr.mxu0 0.0
      %1118 = vmatpush1.msra.mxu0 0.0
      %1119 = vmatprep.subr.mxu0 0.0
      %1120 = vmatpush1.msra.mxu0 0.0
      %1121 = vmatprep.subr.mxu0 0.0
      %1122 = vmatpush1.msra.mxu0 0.0
      %1123 = vmatprep.subr.mxu0 0.0
      %1124 = vmatpush1.msra.mxu0 0.0
      %1125 = vmatprep.subr.mxu0 0.0
      %1126 = vmatpush1.msra.mxu0 0.0
      %1127 = vmatprep.subr.mxu0 0.0
      %1128 = vmatpush1.msra.mxu0 0.0
      %1129 = vmatprep.subr.mxu0 0.0
      %1130 = vmatpush1.msra.mxu0 0.0
      %1131 = vmatprep.subr.mxu0 0.0
      %1132 = vmatpush1.msra.mxu0 0.0
      %1133 = vmatprep.subr.mxu0 0.0
      %1134 = vmatpush1.msra.mxu0 0.0
      %1135 = vmatprep.subr.mxu0 0.0
      %1136 = vmatpush1.msra.mxu0 0.0
      %1137 = vmatprep.subr.mxu0 0.0
      %1138 = vmatpush1.msra.mxu0 0.0
      %1139 = vmatprep.subr.mxu0 0.0
      %1140 = vmatpush1.msra.mxu0 0.0
      %1141 = vmatprep.subr.mxu0 0.0
      %1142 = vmatpush1.msra.mxu0 0.0
      %1143 = vmatprep.subr.mxu0 0.0
      %1144 = vmatpush1.msra.mxu0 0.0
      %1145 = vmatprep.mubr.f32.mxu0 0.0
      %1146 = vmatmul.mubr.f32.gmra.mrb[0].mxu0 %v1079
      %v1147 = vpop.f32.mrb[0].mxu0
      %v1148 = vadd.f32 %v1065, %v1147
      %v1149 = vpop.f32.mrb[0].mxu0
      %1150 = vdwg.mxu0
      %v1152 = vsel %vm1077, %v1057, 0
      %1154 = vmatprep.subr.mxu0 0.0
      %1155 = vmatpush1.msra.mxu0 %v1052
      %1156 = vmatprep.subr.mxu0 0.0
      %1157 = vmatpush1.msra.mxu0 %v1053
      %1158 = vmatprep.subr.mxu0 0.0
      %1159 = vmatpush1.msra.mxu0 0.0
      %1160 = vmatprep.subr.mxu0 0.0
      %1161 = vmatpush1.msra.mxu0 0.0
      %1162 = vmatprep.subr.mxu0 0.0
      %1163 = vmatpush1.msra.mxu0 0.0
      %1164 = vmatprep.subr.mxu0 0.0
      %1165 = vmatpush1.msra.mxu0 0.0
      %1166 = vmatprep.subr.mxu0 0.0
      %1167 = vmatpush1.msra.mxu0 0.0
      %1168 = vmatprep.subr.mxu0 0.0
      %1169 = vmatpush1.msra.mxu0 0.0
      %1170 = vmatprep.subr.mxu0 0.0
      %1171 = vmatpush1.msra.mxu0 0.0
      %1172 = vmatprep.subr.mxu0 0.0
      %1173 = vmatpush1.msra.mxu0 0.0
      %1174 = vmatprep.subr.mxu0 0.0
      %1175 = vmatpush1.msra.mxu0 0.0
      %1176 = vmatprep.subr.mxu0 0.0
      %1177 = vmatpush1.msra.mxu0 0.0
      %1178 = vmatprep.subr.mxu0 0.0
      %1179 = vmatpush1.msra.mxu0 0.0
      %1180 = vmatprep.subr.mxu0 0.0
      %1181 = vmatpush1.msra.mxu0 0.0
      %1182 = vmatprep.subr.mxu0 0.0
      %1183 = vmatpush1.msra.mxu0 0.0
      %1184 = vmatprep.subr.mxu0 0.0
      %1185 = vmatpush1.msra.mxu0 0.0
      %1186 = vmatprep.subr.mxu0 0.0
      %1187 = vmatpush1.msra.mxu0 0.0
      %1188 = vmatprep.subr.mxu0 0.0
      %1189 = vmatpush1.msra.mxu0 0.0
      %1190 = vmatprep.subr.mxu0 0.0
      %1191 = vmatpush1.msra.mxu0 0.0
      %1192 = vmatprep.subr.mxu0 0.0
      %1193 = vmatpush1.msra.mxu0 0.0
      %1194 = vmatprep.subr.mxu0 0.0
      %1195 = vmatpush1.msra.mxu0 0.0
      %1196 = vmatprep.subr.mxu0 0.0
      %1197 = vmatpush1.msra.mxu0 0.0
      %1198 = vmatprep.subr.mxu0 0.0
      %1199 = vmatpush1.msra.mxu0 0.0
      %1200 = vmatprep.subr.mxu0 0.0
      %1201 = vmatpush1.msra.mxu0 0.0
      %1202 = vmatprep.subr.mxu0 0.0
      %1203 = vmatpush1.msra.mxu0 0.0
      %1204 = vmatprep.subr.mxu0 0.0
      %1205 = vmatpush1.msra.mxu0 0.0
      %1206 = vmatprep.subr.mxu0 0.0
      %1207 = vmatpush1.msra.mxu0 0.0
      %1208 = vmatprep.subr.mxu0 0.0
      %1209 = vmatpush1.msra.mxu0 0.0
      %1210 = vmatprep.subr.mxu0 0.0
      %1211 = vmatpush1.msra.mxu0 0.0
      %1212 = vmatprep.subr.mxu0 0.0
      %1213 = vmatpush1.msra.mxu0 0.0
      %1214 = vmatprep.subr.mxu0 0.0
      %1215 = vmatpush1.msra.mxu0 0.0
      %1216 = vmatprep.subr.mxu0 0.0
      %1217 = vmatpush1.msra.mxu0 0.0
      %1218 = vmatprep.mubr.f32.mxu0 0.0
      %1219 = vmatmul.mubr.f32.gmra.mrb[0].mxu0 %v1152
      %v1220 = vpop.f32.mrb[0].mxu0
      %v1221 = vadd.f32 %v1070, %v1220
      %v1222 = vpop.f32.mrb[0].mxu0
      %1223 = vdwg.mxu0
      %v1225 = vsel %vm1077, %v1058, 0
      %1227 = vmatprep.subr.mxu0 0.0
      %1228 = vmatpush1.msra.mxu0 %v1054
      %1229 = vmatprep.subr.mxu0 0.0
      %1230 = vmatpush1.msra.mxu0 %v1055
      %1231 = vmatprep.subr.mxu0 0.0
      %1232 = vmatpush1.msra.mxu0 0.0
      %1233 = vmatprep.subr.mxu0 0.0
      %1234 = vmatpush1.msra.mxu0 0.0
      %1235 = vmatprep.subr.mxu0 0.0
      %1236 = vmatpush1.msra.mxu0 0.0
      %1237 = vmatprep.subr.mxu0 0.0
      %1238 = vmatpush1.msra.mxu0 0.0
      %1239 = vmatprep.subr.mxu0 0.0
      %1240 = vmatpush1.msra.mxu0 0.0
      %1241 = vmatprep.subr.mxu0 0.0
      %1242 = vmatpush1.msra.mxu0 0.0
      %1243 = vmatprep.subr.mxu0 0.0
      %1244 = vmatpush1.msra.mxu0 0.0
      %1245 = vmatprep.subr.mxu0 0.0
      %1246 = vmatpush1.msra.mxu0 0.0
      %1247 = vmatprep.subr.mxu0 0.0
      %1248 = vmatpush1.msra.mxu0 0.0
      %1249 = vmatprep.subr.mxu0 0.0
      %1250 = vmatpush1.msra.mxu0 0.0
      %1251 = vmatprep.subr.mxu0 0.0
      %1252 = vmatpush1.msra.mxu0 0.0
      %1253 = vmatprep.subr.mxu0 0.0
      %1254 = vmatpush1.msra.mxu0 0.0
      %1255 = vmatprep.subr.mxu0 0.0
      %1256 = vmatpush1.msra.mxu0 0.0
      %1257 = vmatprep.subr.mxu0 0.0
      %1258 = vmatpush1.msra.mxu0 0.0
      %1259 = vmatprep.subr.mxu0 0.0
      %1260 = vmatpush1.msra.mxu0 0.0
      %1261 = vmatprep.subr.mxu0 0.0
      %1262 = vmatpush1.msra.mxu0 0.0
      %1263 = vmatprep.subr.mxu0 0.0
      %1264 = vmatpush1.msra.mxu0 0.0
      %1265 = vmatprep.subr.mxu0 0.0
      %1266 = vmatpush1.msra.mxu0 0.0
      %1267 = vmatprep.subr.mxu0 0.0
      %1268 = vmatpush1.msra.mxu0 0.0
      %1269 = vmatprep.subr.mxu0 0.0
      %1270 = vmatpush1.msra.mxu0 0.0
      %1271 = vmatprep.subr.mxu0 0.0
      %1272 = vmatpush1.msra.mxu0 0.0
      %1273 = vmatprep.subr.mxu0 0.0
      %1274 = vmatpush1.msra.mxu0 0.0
      %1275 = vmatprep.subr.mxu0 0.0
      %1276 = vmatpush1.msra.mxu0 0.0
      %1277 = vmatprep.subr.mxu0 0.0
      %1278 = vmatpush1.msra.mxu0 0.0
      %1279 = vmatprep.subr.mxu0 0.0
      %1280 = vmatpush1.msra.mxu0 0.0
      %1281 = vmatprep.subr.mxu0 0.0
      %1282 = vmatpush1.msra.mxu0 0.0
      %1283 = vmatprep.subr.mxu0 0.0
      %1284 = vmatpush1.msra.mxu0 0.0
      %1285 = vmatprep.subr.mxu0 0.0
      %1286 = vmatpush1.msra.mxu0 0.0
      %1287 = vmatprep.subr.mxu0 0.0
      %1288 = vmatpush1.msra.mxu0 0.0
      %1289 = vmatprep.subr.mxu0 0.0
      %1290 = vmatpush1.msra.mxu0 0.0
      %1291 = vmatprep.mubr.f32.mxu0 0.0
      %1292 = vmatmul.mubr.f32.gmra.mrb[0].mxu0 %v1225
      %v1293 = vpop.f32.mrb[0].mxu0
      %v1294 = vadd.f32 %v1075, %v1293
      %v1295 = vpop.f32.mrb[0].mxu0
      %1296 = vdwg.mxu0
      %v1297 = vld [vmem:[%s563] sm:$0xff]
      %v1298 = vld [vmem:[%s563 + $0x8] sm:$0xff]
      %v1299 = vld [vmem:[%s563 + $0x10] sm:$0xff]
      %v1300 = vld [vmem:[%s563 + $0x18] sm:$0xff]
      %v1301 = vld [vmem:[%s563 + $0x20] sm:$0xff]
      %v1302 = vld [vmem:[%s563 + $0x28] sm:$0xff]
      %v1303 = vld [vmem:[%s563 + $0x30] sm:$0xff]
      %v1304 = vld [vmem:[%s563 + $0x38] sm:$0xff]
      %v1305 = vld [vmem:[%s563 + $0x40] sm:$0xff]
      %v1306 = vld [vmem:[%s563 + $0x48] sm:$0xff]
      %v1307 = vld [vmem:[%s563 + $0x50] sm:$0xff]
      %v1308 = vld [vmem:[%s563 + $0x58] sm:$0xff]
      %v1309 = vld [vmem:[%s563 + $0x60] sm:$0xff]
      %v1310 = vld [vmem:[%s563 + $0x68] sm:$0xff]
      %v1311 = vld [vmem:[%s563 + $0x70] sm:$0xff]
      %v1312 = vld [vmem:[%s563 + $0x78] sm:$0xff]
      %v1313 = vld [vmem:[%s563 + $0x80] sm:$0xff]
      %v1314 = vld [vmem:[%s563 + $0x88] sm:$0xff]
      %v1315 = vld [vmem:[%s573] sm:$0xff]
      %v1316 = vld [vmem:[%s573 + $0x8] sm:$0xff]
      %v1317 = vld [vmem:[%s573 + $0x10] sm:$0xff]
      %v1318 = vld [vmem:[%s573 + $0x18] sm:$0xff]
      %v1319 = vld [vmem:[%s573 + $0x20] sm:$0xff]
      %v1320 = vld [vmem:[%s573 + $0x28] sm:$0xff]
      %v1321 = vld [vmem:[%s573 + $0x30] sm:$0xff]
      %v1322 = vld [vmem:[%s573 + $0x38] sm:$0xff]
      %v1323 = vld [vmem:[%s573 + $0x40] sm:$0xff]
      %v1324 = vld [vmem:[%s573 + $0x48] sm:$0xff]
      %v1325 = vld [vmem:[%s573 + $0x50] sm:$0xff]
      %v1326 = vld [vmem:[%s573 + $0x58] sm:$0xff]
      %v1327 = vld [vmem:[%s573 + $0x60] sm:$0xff]
      %v1328 = vld [vmem:[%s573 + $0x68] sm:$0xff]
      %v1329 = vld [vmem:[%s573 + $0x70] sm:$0xff]
      %v1330 = vld [vmem:[%s573 + $0x78] sm:$0xff]
      %v1331 = vld [vmem:[%s573 + $0x80] sm:$0xff]
      %v1332 = vld [vmem:[%s573 + $0x88] sm:$0xff]
      %1334 = vset.pattern.permute.xlu0 0
      %1335 = vperm.xlu0 %1334, %v1297
      %v1336 = vpop.permute.xlu0 %1335
      %1339 = vset.pattern.permute.xlu0 0
      %1340 = vperm.xlu0 %1339, %v1298
      %v1341 = vpop.permute.xlu0 %1340
      %1344 = vset.pattern.permute.xlu0 0
      %1345 = vperm.xlu0 %1344, %v1299
      %v1346 = vpop.permute.xlu0 %1345
      %1349 = vset.pattern.permute.xlu0 0
      %1350 = vperm.xlu0 %1349, %v1300
      %v1351 = vpop.permute.xlu0 %1350
      %1354 = vset.pattern.permute.xlu0 0
      %1355 = vperm.xlu0 %1354, %v1301
      %v1356 = vpop.permute.xlu0 %1355
      %1359 = vset.pattern.permute.xlu0 0
      %1360 = vperm.xlu0 %1359, %v1302
      %v1361 = vpop.permute.xlu0 %1360
      %v1363 = vmul.f32 %v1336, %v1148
      %v1364 = vmul.f32 %v1341, %v1148
      %v1365 = vmul.f32 %v1346, %v1148
      %v1366 = vmul.f32 %v1351, %v1148
      %v1367 = vmul.f32 %v1356, %v1148
      %v1368 = vmul.f32 %v1361, %v1148
      %v1369 = vadd.f32 %v1363, 0.0
      %v1370 = vadd.f32 %v1364, 0.0
      %v1371 = vadd.f32 %v1365, 0.0
      %v1372 = vadd.f32 %v1366, 0.0
      %v1373 = vadd.f32 %v1367, 0.0
      %v1374 = vadd.f32 %v1368, 0.0
      %1376 = vset.pattern.permute.xlu0 0
      %1377 = vperm.xlu0 %1376, %v1303
      %v1378 = vpop.permute.xlu0 %1377
      %1381 = vset.pattern.permute.xlu0 0
      %1382 = vperm.xlu0 %1381, %v1304
      %v1383 = vpop.permute.xlu0 %1382
      %1386 = vset.pattern.permute.xlu0 0
      %1387 = vperm.xlu0 %1386, %v1305
      %v1388 = vpop.permute.xlu0 %1387
      %1391 = vset.pattern.permute.xlu0 0
      %1392 = vperm.xlu0 %1391, %v1306
      %v1393 = vpop.permute.xlu0 %1392
      %1396 = vset.pattern.permute.xlu0 0
      %1397 = vperm.xlu0 %1396, %v1307
      %v1398 = vpop.permute.xlu0 %1397
      %1401 = vset.pattern.permute.xlu0 0
      %1402 = vperm.xlu0 %1401, %v1308
      %v1403 = vpop.permute.xlu0 %1402
      %v1405 = vmul.f32 %v1378, %v1221
      %v1406 = vmul.f32 %v1383, %v1221
      %v1407 = vmul.f32 %v1388, %v1221
      %v1408 = vmul.f32 %v1393, %v1221
      %v1409 = vmul.f32 %v1398, %v1221
      %v1410 = vmul.f32 %v1403, %v1221
      %v1411 = vadd.f32 %v1369, %v1405
      %v1412 = vadd.f32 %v1370, %v1406
      %v1413 = vadd.f32 %v1371, %v1407
      %v1414 = vadd.f32 %v1372, %v1408
      %v1415 = vadd.f32 %v1373, %v1409
      %v1416 = vadd.f32 %v1374, %v1410
      %1418 = vset.pattern.permute.xlu0 0
      %1419 = vperm.xlu0 %1418, %v1309
      %v1420 = vpop.permute.xlu0 %1419
      %1423 = vset.pattern.permute.xlu0 0
      %1424 = vperm.xlu0 %1423, %v1310
      %v1425 = vpop.permute.xlu0 %1424
      %1428 = vset.pattern.permute.xlu0 0
      %1429 = vperm.xlu0 %1428, %v1311
      %v1430 = vpop.permute.xlu0 %1429
      %1433 = vset.pattern.permute.xlu0 0
      %1434 = vperm.xlu0 %1433, %v1312
      %v1435 = vpop.permute.xlu0 %1434
      %1438 = vset.pattern.permute.xlu0 0
      %1439 = vperm.xlu0 %1438, %v1313
      %v1440 = vpop.permute.xlu0 %1439
      %1443 = vset.pattern.permute.xlu0 0
      %1444 = vperm.xlu0 %1443, %v1314
      %v1445 = vpop.permute.xlu0 %1444
      %v1447 = vmul.f32 %v1420, %v1294
      %v1448 = vmul.f32 %v1425, %v1294
      %v1449 = vmul.f32 %v1430, %v1294
      %v1450 = vmul.f32 %v1435, %v1294
      %v1451 = vmul.f32 %v1440, %v1294
      %v1452 = vmul.f32 %v1445, %v1294
      %v1453 = vadd.f32 %v1411, %v1447
      %v1454 = vadd.f32 %v1412, %v1448
      %v1455 = vadd.f32 %v1413, %v1449
      %v1456 = vadd.f32 %v1414, %v1450
      %v1457 = vadd.f32 %v1415, %v1451
      %v1458 = vadd.f32 %v1416, %v1452
      %v1459 = vld [vmem:[%s568] sm:$0xff]
      %v1460 = vld [vmem:[%s568 + $0x8] sm:$0xff]
      %v1461 = vld [vmem:[%s568 + $0x10] sm:$0xff]
      %v1462 = vld [vmem:[%s568 + $0x18] sm:$0xff]
      %v1463 = vld [vmem:[%s568 + $0x20] sm:$0xff]
      %v1464 = vld [vmem:[%s568 + $0x28] sm:$0xff]
      %1466 = vset.pattern.permute.xlu0 0
      %1467 = vperm.xlu0 %1466, %v1459
      %v1468 = vpop.permute.xlu0 %1467
      %1471 = vset.pattern.permute.xlu0 0
      %1472 = vperm.xlu0 %1471, %v1460
      %v1473 = vpop.permute.xlu0 %1472
      %1476 = vset.pattern.permute.xlu0 0
      %1477 = vperm.xlu0 %1476, %v1461
      %v1478 = vpop.permute.xlu0 %1477
      %1481 = vset.pattern.permute.xlu0 0
      %1482 = vperm.xlu0 %1481, %v1462
      %v1483 = vpop.permute.xlu0 %1482
      %1486 = vset.pattern.permute.xlu0 0
      %1487 = vperm.xlu0 %1486, %v1463
      %v1488 = vpop.permute.xlu0 %1487
      %1491 = vset.pattern.permute.xlu0 0
      %1492 = vperm.xlu0 %1491, %v1464
      %v1493 = vpop.permute.xlu0 %1492
      %v1495 = vadd.f32 %v1453, %v1468
      %v1496 = vadd.f32 %v1454, %v1473
      %v1497 = vadd.f32 %v1455, %v1478
      %v1498 = vadd.f32 %v1456, %v1483
      %v1499 = vadd.f32 %v1457, %v1488
      %v1500 = vadd.f32 %v1458, %v1493
      %v1501 = vmul.f32 %v1495, 0.5
      %v1502 = vmul.f32 %v1496, 0.5
      %v1503 = vmul.f32 %v1497, 0.5
      %v1504 = vmul.f32 %v1498, 0.5
      %v1505 = vmul.f32 %v1499, 0.5
      %v1506 = vmul.f32 %v1500, 0.5
      %v1507 = vmul.f32 %v1495, 0.70710677
      %v1508 = vmul.f32 %v1496, 0.70710677
      %v1509 = vmul.f32 %v1497, 0.70710677
      %v1510 = vmul.f32 %v1498, 0.70710677
      %v1511 = vmul.f32 %v1499, 0.70710677
      %v1512 = vmul.f32 %v1500, 0.70710677
      %v1513 = verf.f32.pop %v1507
      %v1514 = verf.f32.pop %v1508
      %v1515 = verf.f32.pop %v1509
      %v1516 = verf.f32.pop %v1510
      %v1517 = verf.f32.pop %v1511
      %v1518 = verf.f32.pop %v1512
      %v1519 = vadd.f32 %v1513, 1.0
      %v1520 = vadd.f32 %v1514, 1.0
      %v1521 = vadd.f32 %v1515, 1.0
      %v1522 = vadd.f32 %v1516, 1.0
      %v1523 = vadd.f32 %v1517, 1.0
      %v1524 = vadd.f32 %v1518, 1.0
      %v1525 = vmul.f32 %v1501, %v1519
      %v1526 = vmul.f32 %v1502, %v1520
      %v1527 = vmul.f32 %v1503, %v1521
      %v1528 = vmul.f32 %v1504, %v1522
      %v1529 = vmul.f32 %v1505, %v1523
      %v1530 = vmul.f32 %v1506, %v1524
      %1532 = vset.pattern.permute.xlu0 0
      %1533 = vperm.xlu0 %1532, %v1315
      %v1534 = vpop.permute.xlu0 %1533
      %1537 = vset.pattern.permute.xlu0 0
      %1538 = vperm.xlu0 %1537, %v1316
      %v1539 = vpop.permute.xlu0 %1538
      %1542 = vset.pattern.permute.xlu0 0
      %1543 = vperm.xlu0 %1542, %v1317
      %v1544 = vpop.permute.xlu0 %1543
      %v1546 = vmul.f32 %v1534, %v1525
      %v1547 = vmul.f32 %v1539, %v1525
      %v1548 = vmul.f32 %v1544, %v1525
      %v1549 = vadd.f32 %v1546, 0.0
      %v1550 = vadd.f32 %v1547, 0.0
      %v1551 = vadd.f32 %v1548, 0.0
      %1553 = vset.pattern.permute.xlu0 0
      %1554 = vperm.xlu0 %1553, %v1318
      %v1555 = vpop.permute.xlu0 %1554
      %1558 = vset.pattern.permute.xlu0 0
      %1559 = vperm.xlu0 %1558, %v1319
      %v1560 = vpop.permute.xlu0 %1559
      %1563 = vset.pattern.permute.xlu0 0
      %1564 = vperm.xlu0 %1563, %v1320
      %v1565 = vpop.permute.xlu0 %1564
      %v1567 = vmul.f32 %v1555, %v1526
      %v1568 = vmul.f32 %v1560, %v1526
      %v1569 = vmul.f32 %v1565, %v1526
      %v1570 = vadd.f32 %v1549, %v1567
      %v1571 = vadd.f32 %v1550, %v1568
      %v1572 = vadd.f32 %v1551, %v1569
      %1574 = vset.pattern.permute.xlu0 0
      %1575 = vperm.xlu0 %1574, %v1321
      %v1576 = vpop.permute.xlu0 %1575
      %1579 = vset.pattern.permute.xlu0 0
      %1580 = vperm.xlu0 %1579, %v1322
      %v1581 = vpop.permute.xlu0 %1580
      %1584 = vset.pattern.permute.xlu0 0
      %1585 = vperm.xlu0 %1584, %v1323
      %v1586 = vpop.permute.xlu0 %1585
      %v1588 = vmul.f32 %v1576, %v1527
      %v1589 = vmul.f32 %v1581, %v1527
      %v1590 = vmul.f32 %v1586, %v1527
      %v1591 = vadd.f32 %v1570, %v1588
      %v1592 = vadd.f32 %v1571, %v1589
      %v1593 = vadd.f32 %v1572, %v1590
      %1595 = vset.pattern.permute.xlu0 0
      %1596 = vperm.xlu0 %1595, %v1324
      %v1597 = vpop.permute.xlu0 %1596
      %1600 = vset.pattern.permute.xlu0 0
      %1601 = vperm.xlu0 %1600, %v1325
      %v1602 = vpop.permute.xlu0 %1601
      %1605 = vset.pattern.permute.xlu0 0
      %1606 = vperm.xlu0 %1605, %v1326
      %v1607 = vpop.permute.xlu0 %1606
      %v1609 = vmul.f32 %v1597, %v1528
      %v1610 = vmul.f32 %v1602, %v1528
      %v1611 = vmul.f32 %v1607, %v1528
      %v1612 = vadd.f32 %v1591, %v1609
      %v1613 = vadd.f32 %v1592, %v1610
      %v1614 = vadd.f32 %v1593, %v1611
      %1616 = vset.pattern.permute.xlu0 0
      %1617 = vperm.xlu0 %1616, %v1327
      %v1618 = vpop.permute.xlu0 %1617
      %1621 = vset.pattern.permute.xlu0 0
      %1622 = vperm.xlu0 %1621, %v1328
      %v1623 = vpop.permute.xlu0 %1622
      %1626 = vset.pattern.permute.xlu0 0
      %1627 = vperm.xlu0 %1626, %v1329
      %v1628 = vpop.permute.xlu0 %1627
      %v1630 = vmul.f32 %v1618, %v1529
      %v1631 = vmul.f32 %v1623, %v1529
      %v1632 = vmul.f32 %v1628, %v1529
      %v1633 = vadd.f32 %v1612, %v1630
      %v1634 = vadd.f32 %v1613, %v1631
      %v1635 = vadd.f32 %v1614, %v1632
      %1637 = vset.pattern.permute.xlu0 0
      %1638 = vperm.xlu0 %1637, %v1330
      %v1639 = vpop.permute.xlu0 %1638
      %1642 = vset.pattern.permute.xlu0 0
      %1643 = vperm.xlu0 %1642, %v1331
      %v1644 = vpop.permute.xlu0 %1643
      %1647 = vset.pattern.permute.xlu0 0
      %1648 = vperm.xlu0 %1647, %v1332
      %v1649 = vpop.permute.xlu0 %1648
      %v1651 = vmul.f32 %v1639, %v1530
      %v1652 = vmul.f32 %v1644, %v1530
      %v1653 = vmul.f32 %v1649, %v1530
      %v1654 = vadd.f32 %v1633, %v1651
      %v1655 = vadd.f32 %v1634, %v1652
      %v1656 = vadd.f32 %v1635, %v1653
      %v1657 = vadd.f32 %v589, %v1654
      %v1658 = vadd.f32 %v590, %v1655
      %v1659 = vadd.f32 %v591, %v1656
      %v1660 = vld [vmem:[%s578] sm:$0xff]
      %v1661 = vld [vmem:[%s578 + $0x8] sm:$0xff]
      %v1662 = vld [vmem:[%s578 + $0x10] sm:$0xff]
      %1664 = vset.pattern.permute.xlu0 0
      %1665 = vperm.xlu0 %1664, %v1660
      %v1666 = vpop.permute.xlu0 %1665
      %1669 = vset.pattern.permute.xlu0 0
      %1670 = vperm.xlu0 %1669, %v1661
      %v1671 = vpop.permute.xlu0 %1670
      %1674 = vset.pattern.permute.xlu0 0
      %1675 = vperm.xlu0 %1674, %v1662
      %v1676 = vpop.permute.xlu0 %1675
      %v1678 = vadd.f32 %v1657, %v1666
      %v1679 = vadd.f32 %v1658, %v1671
      %v1680 = vadd.f32 %v1659, %v1676
      %1681 = vst [vmem:[%s12] sm:$0xff] %v1678
      %1682 = vst [vmem:[%s12 + $0x8] sm:$0xff] %v1679
      %1683 = vst [vmem:[%s12 + $0x10] sm:$0xff] %v1680
      // Predicated region
      $region73: #{stage_forward.1} parent=67 // pred_check
        %p1684 = pneg %p338
      $region74: #{stage_forward.1} parent=67 // pred_check_branch
        %1686 = sbr.rel (%p1684) target = $region76
      $region75: #{stage_forward.1} parent=67 // pred_region
        _
      $region76: #{stage_forward.1} parent=67 // pred_fallthru
        _
      // Predicated region
      $region77: #{stage_forward.1} parent=67 // pred_check
        %p1687 = pneg %p338
      $region78: #{stage_forward.1} parent=67 // pred_check_branch
        %1689 = sbr.rel (%p1687) target = $region80
      $region79: #{stage_forward.1} parent=67 // pred_region
        _
      $region80: #{stage_forward.1} parent=67 // pred_fallthru
        _
    $region68: #{stage_forward.1} parent=5 // pred_fallthru
      _
    %p1690 = scmp.le.s32.totalorder 2, %s18
    // Predicated region
    $region81: #{stage_forward.1} parent=5 // pred_check
      %p1691 = pneg %p1690
    $region82: #{stage_forward.1} parent=5 // pred_check_branch
      %1693 = sbr.rel (%p1691) target = $region84
    $region83: #{stage_forward.1} parent=5 // pred_region
      %s1694 = ssub.s32 %s18, 2
    $region84: #{stage_forward.1} parent=5 // pred_fallthru
      _
  $region6: #{stage_forward.1} parent=0 // loop_footer
    %s22 = sadd.s32 1, %s18
  $region7: #{stage_forward.1} parent=0 // loop_footer_branch
    %17 = sbr.rel target = $region3
  $region8: #{stage_forward.1} parent=0 // loop_exit
    _

</llo_original>
